<compile_context>
chip_gen: v5e
topology: v5e:2x2
jax: 0.10.0
libtpu: 0.0.40
codegen_flags: <defaults>
</compile_context>

<pallas_src>
import functools
import math

import jax
import jax.numpy as jnp
from jax.experimental import pallas as pl
from jax.experimental.pallas import tpu as pltpu


def _round_up(x, m):
    return ((x + m - 1) // m) * m


_BATCH_TILE = 128       # base MXU-friendly M tile
_MAX_BATCH_TILE = 512   # cap so per-step VMEM stays small even on v7x (64 MiB)
_H1_LOGICAL = 400       # torch hidden width
_H1_PAD = 512           # padded to a multiple of 128 lanes
_LANE = 128


def _head_layout(hidden_dim):
    """Returns (lat_pad, head_pad, lv_off) for the packed [mu | log_var] head."""
    lat_pad = _round_up(hidden_dim, _LANE)
    if 2 * hidden_dim <= lat_pad:
        # Pack both heads into one lane-aligned block of width lat_pad.
        return lat_pad, lat_pad, lat_pad // 2
    return lat_pad, 2 * lat_pad, lat_pad


def _pick_batch_tile(batch):
    """Adaptive batch tile: no 128-row padding for tiny batches; for large
    batches keep >= 2 grid steps (v7x megacore) and cap the tile at 512."""
    b8 = _round_up(max(batch, 1), 8)
    if b8 <= _BATCH_TILE:
        return b8
    half = (b8 + 1) // 2
    return min(_MAX_BATCH_TILE, _round_up(half, _BATCH_TILE))


def _vae_mlp_kernel(
    x_ref,             # (TB, F_pad)            bf16
    w1_ref, b1_ref,    # (F_pad, H1) bf16 , (1, H1)      f32
    wh_ref, bh_ref,    # (H1, HEAD)  bf16 , (1, HEAD)    f32  packed [mu | log_var]
    w3_ref, b3_ref,    # (LAT, H1)   bf16 , (1, H1)      f32
    w4_ref, b4_ref,    # (H1, F_pad) bf16 , (1, F_pad)   f32
    rec_ref,           # (TB, F_pad)            f32  sigmoid output
    mulv_ref,          # (TB, HEAD)             f32  packed [mu | log_var]
    *,
    lat_pad,
):
    x = x_ref[...]  # already bf16 (cast done in the wrapper)

    # ---- encode ----
    h1 = jnp.dot(x, w1_ref[...], preferred_element_type=jnp.float32) + b1_ref[...]
    h1 = jnp.maximum(h1, 0.0).astype(jnp.bfloat16)

    head = jnp.dot(h1, wh_ref[...], preferred_element_type=jnp.float32) + bh_ref[...]
    mulv_ref[...] = head  # lane-dense packed [mu | log_var]

    # ---- reparameterize (eval mode: z = mu) ----
    # Head columns >= hidden_dim (including the packed log_var lanes) hit
    # all-zero rows of w3, so they contribute nothing to the decode matmul.
    z = head[:, :lat_pad].astype(jnp.bfloat16)

    # ---- decode ----
    h3 = jnp.dot(z, w3_ref[...], preferred_element_type=jnp.float32) + b3_ref[...]
    h3 = jnp.maximum(h3, 0.0).astype(jnp.bfloat16)

    logits = jnp.dot(h3, w4_ref[...], preferred_element_type=jnp.float32) + b4_ref[...]
    rec_ref[...] = jax.nn.sigmoid(logits)


def vae_mlp_forward(x_nchw, params, img_size, hidden_dim):
    """x_nchw: (B, 1, H, W). Returns (rec (B,1,H,W), mu (B,hid), log_var (B,hid))."""
    B = x_nchw.shape[0]
    H, W = img_size
    F = H * W

    F_pad = params["w1"].shape[0]
    H1 = params["w1"].shape[1]
    lat_pad, head_pad, lv_off = _head_layout(hidden_dim)
    assert params["w3"].shape[0] == lat_pad
    assert params["wh"].shape[1] == head_pad

    TB = _pick_batch_tile(B)
    B_pad = _round_up(B, TB)

    # Flatten (free reshape) + cast to bf16 in the wrapper so the kernel DMAs
    # half the bytes. Pad only when actually needed (F=H*W is often already a
    # multiple of 128, e.g. 16x16 -> 256).
    x_flat = x_nchw.reshape(B, F).astype(jnp.bfloat16)
    if B_pad != B or F_pad != F:
        x_p = jnp.pad(x_flat, ((0, B_pad - B), (0, F_pad - F)))
    else:
        x_p = x_flat

    grid = (B_pad // TB,)

    row = lambda i: (i, 0)   # activation tiles march over batch
    res = lambda i: (0, 0)   # weights/biases resident in VMEM across grid steps

    in_specs = [
        pl.BlockSpec((TB, F_pad), row),
        pl.BlockSpec((F_pad, H1), res),
        pl.BlockSpec((1, H1), res),
        pl.BlockSpec((H1, head_pad), res),
        pl.BlockSpec((1, head_pad), res),
        pl.BlockSpec((lat_pad, H1), res),
        pl.BlockSpec((1, H1), res),
        pl.BlockSpec((H1, F_pad), res),
        pl.BlockSpec((1, F_pad), res),
    ]
    out_specs = (
        pl.BlockSpec((TB, F_pad), row),
        pl.BlockSpec((TB, head_pad), row),
    )

    flops = 2 * B_pad * (F_pad * H1 + H1 * head_pad + lat_pad * H1 + H1 * F_pad)
    weight_bytes = sum(int(v.size) * v.dtype.itemsize for v in params.values())
    bytes_accessed = (weight_bytes
                      + B_pad * F_pad * 2            # x in (bf16)
                      + B_pad * F_pad * 4            # rec out (f32)
                      + B_pad * head_pad * 4)        # packed mu|log_var out

    rec_p, mulv_p = pl.pallas_call(
        functools.partial(_vae_mlp_kernel, lat_pad=lat_pad),
        out_shape=(
            jax.ShapeDtypeStruct((B_pad, F_pad), jnp.float32),
            jax.ShapeDtypeStruct((B_pad, head_pad), jnp.float32),
        ),
        grid=grid,
        in_specs=in_specs,
        out_specs=out_specs,
        compiler_params=pltpu.CompilerParams(
            dimension_semantics=("parallel",),
        ),
        cost_estimate=pl.CostEstimate(
            flops=flops,
            transcendentals=B_pad * F_pad,
            bytes_accessed=bytes_accessed,
        ),
    )(
        x_p,
        params["w1"], params["b1"],
        params["wh"], params["bh"],
        params["w3"], params["b3"],
        params["w4"], params["b4"],
    )

    # Slice only when padding was actually introduced (reshape alone is free).
    rec = rec_p if (B_pad == B and F_pad == F) else rec_p[:B, :F]
    rec = rec.reshape(B, 1, H, W)
    mu = mulv_p[:B, :hidden_dim]
    log_var = mulv_p[:B, lv_off:lv_off + hidden_dim]
    return rec, mu, log_var


def init_params(key, img_size, hidden_dim):
    """Init matching nn.Linear default (uniform +-1/sqrt(fan_in)), stored
    transposed ((in, out)), zero-padded to lane-aligned shapes, weights in
    bfloat16, biases in f32. The mu/log_var heads are packed into ONE
    lane-aligned weight (mu at cols [0:hid], log_var at cols [lv_off:lv_off+hid])."""
    F = img_size[0] * img_size[1]
    F_pad = _round_up(F, _LANE)
    H1 = _H1_PAD
    lat_pad, head_pad, lv_off = _head_layout(hidden_dim)

    def linear(key, fan_in, fan_out, pad_in, pad_out, col_off=0):
        kw, kb = jax.random.split(key)
        bound = 1.0 / math.sqrt(fan_in)
        w = jax.random.uniform(kw, (fan_in, fan_out), jnp.float32, -bound, bound)
        b = jax.random.uniform(kb, (fan_out,), jnp.float32, -bound, bound)
        w_p = (jnp.zeros((pad_in, pad_out), jnp.float32)
               .at[:fan_in, col_off:col_off + fan_out].set(w))
        b_p = (jnp.zeros((1, pad_out), jnp.float32)
               .at[0, col_off:col_off + fan_out].set(b))
        return w_p, b_p

    k1, k2, k3, k4, k5 = jax.random.split(key, 5)
    w1, b1 = linear(k1, F, _H1_LOGICAL, F_pad, H1)
    wmu, bmu = linear(k2, _H1_LOGICAL, hidden_dim, H1, head_pad, col_off=0)
    wlv, blv = linear(k3, _H1_LOGICAL, hidden_dim, H1, head_pad, col_off=lv_off)
    # w3's rows beyond hidden_dim MUST stay zero (packed-head invariant).
    w3, b3 = linear(k4, hidden_dim, _H1_LOGICAL, lat_pad, H1)
    w4, b4 = linear(k5, _H1_LOGICAL, F, H1, F_pad)

    # Packed [mu | log_var] head: disjoint column ranges, so add combines them.
    wh = wmu + wlv
    bh = bmu + blv

    bf16 = jnp.bfloat16
    return dict(
        w1=w1.astype(bf16), b1=b1,
        wh=wh.astype(bf16), bh=bh,
        w3=w3.astype(bf16), b3=b3,
        w4=w4.astype(bf16), b4=b4,
    )


def _reference_forward(x_nchw, params, img_size, hidden_dim):
    """Plain-JAX (f32 compute) reference using the same bf16-stored weights."""
    B = x_nchw.shape[0]
    H, W = img_size
    F = H * W
    F_pad = params["w1"].shape[0]
    lat_pad, head_pad, lv_off = _head_layout(hidden_dim)

    x = x_nchw.reshape(B, F).astype(jnp.float32)
    x_p = jnp.zeros((B, F_pad), jnp.float32).at[:, :F].set(x)

    w1 = params["w1"].astype(jnp.float32)
    wh = params["wh"].astype(jnp.float32)
    w3 = params["w3"].astype(jnp.float32)
    w4 = params["w4"].astype(jnp.float32)

    h1 = jnp.maximum(x_p @ w1 + params["b1"], 0.0)
    head = h1 @ wh + params["bh"]
    mu = head[:, :hidden_dim]
    lv = head[:, lv_off:lv_off + hidden_dim]
    z = head[:, :lat_pad]
    h3 = jnp.maximum(z @ w3 + params["b3"], 0.0)
    rec = jax.nn.sigmoid(h3 @ w4 + params["b4"])
    rec = rec[:, :F].reshape(B, 1, H, W)
    return rec, mu, lv


def _check(x, params, img_size, hidden_dim):
    rec, mu, lv = vae_mlp_forward(x, params, img_size, hidden_dim)
    jax.block_until_ready((rec, mu, lv))
    rec_r, mu_r, lv_r = _reference_forward(x, params, img_size, hidden_dim)
    B = x.shape[0]
    assert rec.shape == (B, 1, img_size[0], img_size[1])
    assert mu.shape == (B, hidden_dim)
    assert lv.shape == (B, hidden_dim)
    # bf16 weights + bf16 activation casts -> loosened tolerances vs f32 ref.
    assert jnp.allclose(rec, rec_r, atol=2e-2), float(jnp.abs(rec - rec_r).max())
    assert jnp.allclose(mu, mu_r, atol=3e-2, rtol=3e-2), float(jnp.abs(mu - mu_r).max())
    assert jnp.allclose(lv, lv_r, atol=3e-2, rtol=3e-2), float(jnp.abs(lv - lv_r).max())
    return rec, mu, lv


if __name__ == "__main__":
    img_size = (16, 16)
    hidden_dim = 32

    key = jax.random.PRNGKey(0)
    k_x, k_x2, k_p = jax.random.split(key, 3)
    params = init_params(k_p, img_size, hidden_dim)

    # Small demo shape: batch of 2 -> adaptive tile of 8 rows (no 128-row pad).
    x = jax.random.normal(k_x, (2, 1, img_size[0], img_size[1]), jnp.float32)
    _check(x, params, img_size, hidden_dim)

    # Exercise multiple grid steps (batch spans 2 tiles of 128 rows).
    x2 = jax.random.normal(k_x2, (130, 1, img_size[0], img_size[1]), jnp.float32)
    _check(x2, params, img_size, hidden_dim)

    print("KERNEL_OK")
</pallas_src>

<mosaic_0001>
module attributes {stable_mosaic.version = 11 : i64} {
  func.func @_vae_mlp_kernel(%arg0: i32, %arg1: memref<8x256xbf16, #tpu.memory_space<vmem>>, %arg2: memref<256x512xbf16, #tpu.memory_space<vmem>>, %arg3: memref<1x512xf32, #tpu.memory_space<vmem>>, %arg4: memref<512x128xbf16, #tpu.memory_space<vmem>>, %arg5: memref<1x128xf32, #tpu.memory_space<vmem>>, %arg6: memref<128x512xbf16, #tpu.memory_space<vmem>>, %arg7: memref<1x512xf32, #tpu.memory_space<vmem>>, %arg8: memref<512x256xbf16, #tpu.memory_space<vmem>>, %arg9: memref<1x256xf32, #tpu.memory_space<vmem>>, %arg10: memref<8x256xf32, #tpu.memory_space<vmem>>, %arg11: memref<8x128xf32, #tpu.memory_space<vmem>>) attributes {dimension_semantics = [#tpu.dimension_semantics<parallel>], iteration_bounds = array<i64: 1>, scalar_prefetch = 0 : i64, scratch_operands = 0 : i64, tpu.core_type = #tpu.core_type<tc>, window_params = [{transform_indices = @transform_0, window_bounds = array<i64: 8, 256>}, {pipeline_mode = #tpu.pipeline_mode<synchronous>, transform_indices = @transform_1, window_bounds = array<i64: 256, 512>}, {pipeline_mode = #tpu.pipeline_mode<synchronous>, transform_indices = @transform_2, window_bounds = array<i64: 1, 512>}, {pipeline_mode = #tpu.pipeline_mode<synchronous>, transform_indices = @transform_3, window_bounds = array<i64: 512, 128>}, {pipeline_mode = #tpu.pipeline_mode<synchronous>, transform_indices = @transform_4, window_bounds = array<i64: 1, 128>}, {pipeline_mode = #tpu.pipeline_mode<synchronous>, transform_indices = @transform_5, window_bounds = array<i64: 128, 512>}, {pipeline_mode = #tpu.pipeline_mode<synchronous>, transform_indices = @transform_6, window_bounds = array<i64: 1, 512>}, {pipeline_mode = #tpu.pipeline_mode<synchronous>, transform_indices = @transform_7, window_bounds = array<i64: 512, 256>}, {pipeline_mode = #tpu.pipeline_mode<synchronous>, transform_indices = @transform_8, window_bounds = array<i64: 1, 256>}, {transform_indices = @transform_9, window_bounds = array<i64: 8, 256>}, {transform_indices = @transform_10, window_bounds = array<i64: 8, 128>}]} {
    %c0 = arith.constant 0 : index
    %c0_0 = arith.constant 0 : index
    %0 = vector.load %arg1[%c0, %c0_0] : memref<8x256xbf16, #tpu.memory_space<vmem>>, vector<8x256xbf16>
    %c0_1 = arith.constant 0 : index
    %c0_2 = arith.constant 0 : index
    %1 = vector.load %arg2[%c0_1, %c0_2] : memref<256x512xbf16, #tpu.memory_space<vmem>>, vector<256x512xbf16>
    %cst = arith.constant dense<0.000000e+00> : vector<8x512xf32>
    %2 = tpu.matmul %0, %1, %cst {dimension_numbers = #tpu.dot_dimension_numbers<[1], [0], [0], [1], [0, 0, 1, 1], [], []>} : vector<8x256xbf16>, vector<256x512xbf16>, vector<8x512xf32> -> vector<8x512xf32>
    %c0_3 = arith.constant 0 : index
    %c0_4 = arith.constant 0 : index
    %3 = vector.load %arg3[%c0_3, %c0_4] : memref<1x512xf32, #tpu.memory_space<vmem>>, vector<1x512xf32>
    %4 = vector.broadcast %3 : vector<1x512xf32> to vector<8x512xf32>
    %5 = arith.addf %2, %4 : vector<8x512xf32>
    %cst_5 = arith.constant 0.000000e+00 : f32
    %6 = vector.broadcast %cst_5 : f32 to vector<8x512xf32>
    %7 = arith.maximumf %5, %6 : vector<8x512xf32>
    %8 = arith.truncf %7 : vector<8x512xf32> to vector<8x512xbf16>
    %c0_6 = arith.constant 0 : index
    %c0_7 = arith.constant 0 : index
    %9 = vector.load %arg4[%c0_6, %c0_7] : memref<512x128xbf16, #tpu.memory_space<vmem>>, vector<512x128xbf16>
    %cst_8 = arith.constant dense<0.000000e+00> : vector<8x128xf32>
    %10 = tpu.matmul %8, %9, %cst_8 {dimension_numbers = #tpu.dot_dimension_numbers<[1], [0], [0], [1], [0, 0, 1, 1], [], []>} : vector<8x512xbf16>, vector<512x128xbf16>, vector<8x128xf32> -> vector<8x128xf32>
    %c0_9 = arith.constant 0 : index
    %c0_10 = arith.constant 0 : index
    %11 = vector.load %arg5[%c0_9, %c0_10] : memref<1x128xf32, #tpu.memory_space<vmem>>, vector<1x128xf32>
    %12 = vector.broadcast %11 : vector<1x128xf32> to vector<8x128xf32>
    %13 = arith.addf %10, %12 : vector<8x128xf32>
    %c0_11 = arith.constant 0 : index
    %c0_12 = arith.constant 0 : index
    %14 = vector.load %arg11[%c0_11, %c0_12] : memref<8x128xf32, #tpu.memory_space<vmem>>, vector<8x128xf32>
    tpu.vector_store %arg11[%c0_11, %c0_12], %13 {strides = array<i32>} : memref<8x128xf32, #tpu.memory_space<vmem>>, vector<8x128xf32>,
    %15 = arith.truncf %13 : vector<8x128xf32> to vector<8x128xbf16>
    %c0_13 = arith.constant 0 : index
    %c0_14 = arith.constant 0 : index
    %16 = vector.load %arg6[%c0_13, %c0_14] : memref<128x512xbf16, #tpu.memory_space<vmem>>, vector<128x512xbf16>
    %cst_15 = arith.constant dense<0.000000e+00> : vector<8x512xf32>
    %17 = tpu.matmul %15, %16, %cst_15 {dimension_numbers = #tpu.dot_dimension_numbers<[1], [0], [0], [1], [0, 0, 1, 1], [], []>} : vector<8x128xbf16>, vector<128x512xbf16>, vector<8x512xf32> -> vector<8x512xf32>
    %c0_16 = arith.constant 0 : index
    %c0_17 = arith.constant 0 : index
    %18 = vector.load %arg7[%c0_16, %c0_17] : memref<1x512xf32, #tpu.memory_space<vmem>>, vector<1x512xf32>
    %19 = vector.broadcast %18 : vector<1x512xf32> to vector<8x512xf32>
    %20 = arith.addf %17, %19 : vector<8x512xf32>
    %cst_18 = arith.constant 0.000000e+00 : f32
    %21 = vector.broadcast %cst_18 : f32 to vector<8x512xf32>
    %22 = arith.maximumf %20, %21 : vector<8x512xf32>
    %23 = arith.truncf %22 : vector<8x512xf32> to vector<8x512xbf16>
    %c0_19 = arith.constant 0 : index
    %c0_20 = arith.constant 0 : index
    %24 = vector.load %arg8[%c0_19, %c0_20] : memref<512x256xbf16, #tpu.memory_space<vmem>>, vector<512x256xbf16>
    %cst_21 = arith.constant dense<0.000000e+00> : vector<8x256xf32>
    %25 = tpu.matmul %23, %24, %cst_21 {dimension_numbers = #tpu.dot_dimension_numbers<[1], [0], [0], [1], [0, 0, 1, 1], [], []>} : vector<8x512xbf16>, vector<512x256xbf16>, vector<8x256xf32> -> vector<8x256xf32>
    %c0_22 = arith.constant 0 : index
    %c0_23 = arith.constant 0 : index
    %26 = vector.load %arg9[%c0_22, %c0_23] : memref<1x256xf32, #tpu.memory_space<vmem>>, vector<1x256xf32>
    %27 = vector.broadcast %26 : vector<1x256xf32> to vector<8x256xf32>
    %28 = arith.addf %25, %27 : vector<8x256xf32>
    %29 = arith.negf %28 : vector<8x256xf32>
    %30 = math.exp %29 : vector<8x256xf32>
    %cst_24 = arith.constant 1.000000e+00 : f32
    %31 = vector.broadcast %cst_24 : f32 to vector<8x256xf32>
    %32 = arith.addf %31, %30 : vector<8x256xf32>
    %33 = arith.divf %31, %32 : vector<8x256xf32>
    %c0_25 = arith.constant 0 : index
    %c0_26 = arith.constant 0 : index
    %34 = vector.load %arg10[%c0_25, %c0_26] : memref<8x256xf32, #tpu.memory_space<vmem>>, vector<8x256xf32>
    tpu.vector_store %arg10[%c0_25, %c0_26], %33 {strides = array<i32>} : memref<8x256xf32, #tpu.memory_space<vmem>>, vector<8x256xf32>,
    return
  }
  func.func @transform_0(%arg0: i32) -> (i32, i32) {
    %c0_i32 = arith.constant 0 : i32
    %c0_i32_0 = arith.constant 0 : i32
    return %arg0, %c0_i32 : i32, i32
  }
  func.func @transform_1(%arg0: i32) -> (i32, i32) {
    %c0_i32 = arith.constant 0 : i32
    %c0_i32_0 = arith.constant 0 : i32
    %c0_i32_1 = arith.constant 0 : i32
    return %c0_i32, %c0_i32_0 : i32, i32
  }
  func.func @transform_2(%arg0: i32) -> (i32, i32) {
    %c0_i32 = arith.constant 0 : i32
    %c0_i32_0 = arith.constant 0 : i32
    %c0_i32_1 = arith.constant 0 : i32
    return %c0_i32, %c0_i32_0 : i32, i32
  }
  func.func @transform_3(%arg0: i32) -> (i32, i32) {
    %c0_i32 = arith.constant 0 : i32
    %c0_i32_0 = arith.constant 0 : i32
    %c0_i32_1 = arith.constant 0 : i32
    return %c0_i32, %c0_i32_0 : i32, i32
  }
  func.func @transform_4(%arg0: i32) -> (i32, i32) {
    %c0_i32 = arith.constant 0 : i32
    %c0_i32_0 = arith.constant 0 : i32
    %c0_i32_1 = arith.constant 0 : i32
    return %c0_i32, %c0_i32_0 : i32, i32
  }
  func.func @transform_5(%arg0: i32) -> (i32, i32) {
    %c0_i32 = arith.constant 0 : i32
    %c0_i32_0 = arith.constant 0 : i32
    %c0_i32_1 = arith.constant 0 : i32
    return %c0_i32, %c0_i32_0 : i32, i32
  }
  func.func @transform_6(%arg0: i32) -> (i32, i32) {
    %c0_i32 = arith.constant 0 : i32
    %c0_i32_0 = arith.constant 0 : i32
    %c0_i32_1 = arith.constant 0 : i32
    return %c0_i32, %c0_i32_0 : i32, i32
  }
  func.func @transform_7(%arg0: i32) -> (i32, i32) {
    %c0_i32 = arith.constant 0 : i32
    %c0_i32_0 = arith.constant 0 : i32
    %c0_i32_1 = arith.constant 0 : i32
    return %c0_i32, %c0_i32_0 : i32, i32
  }
  func.func @transform_8(%arg0: i32) -> (i32, i32) {
    %c0_i32 = arith.constant 0 : i32
    %c0_i32_0 = arith.constant 0 : i32
    %c0_i32_1 = arith.constant 0 : i32
    return %c0_i32, %c0_i32_0 : i32, i32
  }
  func.func @transform_9(%arg0: i32) -> (i32, i32) {
    %c0_i32 = arith.constant 0 : i32
    %c0_i32_0 = arith.constant 0 : i32
    return %arg0, %c0_i32 : i32, i32
  }
  func.func @transform_10(%arg0: i32) -> (i32, i32) {
    %c0_i32 = arith.constant 0 : i32
    %c0_i32_0 = arith.constant 0 : i32
    return %arg0, %c0_i32 : i32, i32
  }
}

</mosaic_0001>

<llo_original>
// kernel: tpu_custom_call.1
$region0: #{tpu_custom_call.1}
  #allocation0 [shape = 'u32[]', space=smem, size = 0x4, offset = 0x4, fixed_abs, tag = 'smem constant byte address 0x4 - core index']
  #allocation1 [shape = 'u32[72,128]{1,0:T(1,128)}', space=vmem, size = 0x9000, scoped, tag = 'internal scratch']
  %s0 = inlined_call_operand.hbm [shape: bf16[8,256], index: 0, kind: input, shape index: {}]
  %s1 = inlined_call_operand.hbm [shape: bf16[256,512], index: 1, kind: input, shape index: {}]
  %s2 = inlined_call_operand.hbm [shape: f32[1,512], index: 2, kind: input, shape index: {}]
  %s3 = inlined_call_operand.hbm [shape: bf16[512,128], index: 3, kind: input, shape index: {}]
  %s4 = inlined_call_operand.hbm [shape: f32[1,128], index: 4, kind: input, shape index: {}]
  %s5 = inlined_call_operand.hbm [shape: bf16[128,512], index: 5, kind: input, shape index: {}]
  %s6 = inlined_call_operand.vmem [shape: f32[1,512], index: 6, kind: input, shape index: {}]
  %s7 = inlined_call_operand.hbm [shape: bf16[512,256], index: 7, kind: input, shape index: {}]
  %s8 = inlined_call_operand.vmem [shape: f32[1,256], index: 8, kind: input, shape index: {}]
  %s9 = inlined_call_operand.hbm [shape: f32[8,256], index: 9, kind: output, shape index: {0}]
  %s10 = inlined_call_operand.hbm [shape: f32[8,128], index: 10, kind: output, shape index: {1}]
  %11 = xla_tuple %s9, %s10
  %s12 = sld [smem:[#allocation0]]
  $region82: #{tpu_custom_call.1} parent=0
    _
  %s14 = ssub.s32 1, %s12
  %s15 = scalar_select 0, %s14, %s12
  $region1: #{tpu_custom_call.1} parent=0
    #allocation2 [shape = 'u8[4096]{0}', space=vmem, size = 0x1000, scoped, tag = 'input window, operand 0, single buffered']
    #allocation3 [shape = 's32[1]{0}', space=sflag, size = 0x4, scoped, tag = 'scoped memory for tpu_custom_call.1']
    #allocation4 [shape = 's32[1]{0}', space=sflag, size = 0x4, scoped, tag = 'scoped memory for tpu_custom_call.1']
    #allocation5 [shape = 'u8[262144]{0}', space=vmem, size = 0x40000, scoped, tag = 'input window, operand 1, single buffered']
    #allocation6 [shape = 's32[1]{0}', space=sflag, size = 0x4, scoped, tag = 'scoped memory for tpu_custom_call.1']
    #allocation7 [shape = 'u8[2048]{0}', space=vmem, size = 0x800, scoped, tag = 'input window, operand 2, single buffered']
    #allocation8 [shape = 'u8[131072]{0}', space=vmem, size = 0x20000, scoped, tag = 'input window, operand 3, single buffered']
    #allocation9 [shape = 's32[1]{0}', space=sflag, size = 0x4, scoped, tag = 'scoped memory for tpu_custom_call.1']
    #allocation10 [shape = 'u8[512]{0}', space=vmem, size = 0x400, scoped, tag = 'input window, operand 4, single buffered']
    #allocation11 [shape = 'u8[131072]{0}', space=vmem, size = 0x20000, scoped, tag = 'input window, operand 5, single buffered']
    #allocation12 [shape = 's32[1]{0}', space=sflag, size = 0x4, scoped, tag = 'scoped memory for tpu_custom_call.1']
    #allocation13 [shape = 'u8[262144]{0}', space=vmem, size = 0x40000, scoped, tag = 'input window, operand 7, single buffered']
    #allocation14 [shape = 'u8[8192]{0}', space=vmem, size = 0x2000, scoped, tag = 'output window, operand 0, single buffered']
    #allocation15 [shape = 'u8[4096]{0}', space=vmem, size = 0x1000, scoped, tag = 'output window, operand 1, single buffered']
    #allocation16 [shape = 's32[1]{0}', space=sflag, size = 0x4, scoped, tag = 'scoped memory for tpu_custom_call.1']
    %16 = vsyncpa [#allocation3], 0
    %17 = vsyncpa [#allocation6], 0
    %18 = vsyncpa [#allocation9], 0
    %19 = vsyncpa [#allocation12], 0
    %20 = vsyncpa [#allocation4], 0
    %21 = vsyncpa [#allocation16], 0
    // Predicated region
    $region2: #{tpu_custom_call.1} parent=1 // pred_check
      _
    $region3: #{tpu_custom_call.1} parent=1 // pred_check_branch
      %23 = sbr.rel (0) target = $region5
    $region4: #{tpu_custom_call.1} parent=1 // pred_region
      %25 = vsyncadd [#allocation3], 0
      %s27 = sshll.u32 %s0, 4
      %s28 = int_to_ptr.hbm [resolvable:$true] %s27
      %s29 = sshll.u32 [#allocation2], 4
      %s30 = int_to_ptr.vmem [resolvable:$true] %s29
      %32 = dma.hbm_to_vmem [thread:$0]  %s28, 128, %s30, [#allocation3]
    $region5: #{tpu_custom_call.1} parent=1 // pred_fallthru
      _
    // Predicated region
    $region6: #{tpu_custom_call.1} parent=1 // pred_check
      _
    $region7: #{tpu_custom_call.1} parent=1 // pred_check_branch
      %34 = sbr.rel (0) target = $region9
    $region8: #{tpu_custom_call.1} parent=1 // pred_region
      %36 = vsyncadd [#allocation6], 0
      %s37 = sshll.u32 %s1, 4
      %s38 = int_to_ptr.hbm [resolvable:$true] %s37
      %s39 = sshll.u32 [#allocation5], 4
      %s40 = int_to_ptr.vmem [resolvable:$true] %s39
      %45 = dma.hbm_to_vmem [thread:$0]  %s38, 8192, %s40, [#allocation6], 256, 256, 16
    $region9: #{tpu_custom_call.1} parent=1 // pred_fallthru
      _
    // Predicated region
    $region10: #{tpu_custom_call.1} parent=1 // pred_check
      _
    $region11: #{tpu_custom_call.1} parent=1 // pred_check_branch
      %47 = sbr.rel (0) target = $region13
    $region12: #{tpu_custom_call.1} parent=1 // pred_region
      %49 = vsyncadd [#allocation6], 0
      %s51 = sshll.u32 %s2, 4
      %s52 = int_to_ptr.hbm [resolvable:$true] %s51
      %s53 = sshll.u32 [#allocation7], 4
      %s54 = int_to_ptr.vmem [resolvable:$true] %s53
      %56 = dma.hbm_to_vmem [thread:$0]  %s52, 64, %s54, [#allocation6]
    $region13: #{tpu_custom_call.1} parent=1 // pred_fallthru
      _
    // Predicated region
    $region14: #{tpu_custom_call.1} parent=1 // pred_check
      _
    $region15: #{tpu_custom_call.1} parent=1 // pred_check_branch
      %58 = sbr.rel (0) target = $region17
    $region16: #{tpu_custom_call.1} parent=1 // pred_region
      %60 = vsyncadd [#allocation9], 0
      %s61 = sshll.u32 %s3, 4
      %s62 = int_to_ptr.hbm [resolvable:$true] %s61
      %s63 = sshll.u32 [#allocation8], 4
      %s64 = int_to_ptr.vmem [resolvable:$true] %s63
      %69 = dma.hbm_to_vmem [thread:$0]  %s62, 4096, %s64, [#allocation9], 64, 64, 4
    $region17: #{tpu_custom_call.1} parent=1 // pred_fallthru
      _
    // Predicated region
    $region18: #{tpu_custom_call.1} parent=1 // pred_check
      _
    $region19: #{tpu_custom_call.1} parent=1 // pred_check_branch
      %71 = sbr.rel (0) target = $region21
    $region20: #{tpu_custom_call.1} parent=1 // pred_region
      %73 = vsyncadd [#allocation9], 0
      %s75 = sshll.u32 %s4, 4
      %s76 = int_to_ptr.hbm [resolvable:$true] %s75
      %s77 = sshll.u32 [#allocation10], 4
      %s78 = int_to_ptr.vmem [resolvable:$true] %s77
      %80 = dma.hbm_to_vmem [thread:$0]  %s76, 16, %s78, [#allocation9]
    $region21: #{tpu_custom_call.1} parent=1 // pred_fallthru
      _
    // Predicated region
    $region22: #{tpu_custom_call.1} parent=1 // pred_check
      _
    $region23: #{tpu_custom_call.1} parent=1 // pred_check_branch
      %82 = sbr.rel (0) target = $region25
    $region24: #{tpu_custom_call.1} parent=1 // pred_region
      %84 = vsyncadd [#allocation12], 0
      %s85 = sshll.u32 %s5, 4
      %s86 = int_to_ptr.hbm [resolvable:$true] %s85
      %s87 = sshll.u32 [#allocation11], 4
      %s88 = int_to_ptr.vmem [resolvable:$true] %s87
      %93 = dma.hbm_to_vmem [thread:$0]  %s86, 4096, %s88, [#allocation12], 256, 256, 16
    $region25: #{tpu_custom_call.1} parent=1 // pred_fallthru
      _
    // Predicated region
    $region26: #{tpu_custom_call.1} parent=1 // pred_check
      _
    $region27: #{tpu_custom_call.1} parent=1 // pred_check_branch
      %95 = sbr.rel (0) target = $region29
    $region28: #{tpu_custom_call.1} parent=1 // pred_region
      _
    $region29: #{tpu_custom_call.1} parent=1 // pred_fallthru
      _
    // Predicated region
    $region30: #{tpu_custom_call.1} parent=1 // pred_check
      _
    $region31: #{tpu_custom_call.1} parent=1 // pred_check_branch
      %97 = sbr.rel (0) target = $region33
    $region32: #{tpu_custom_call.1} parent=1 // pred_region
      %99 = vsyncadd [#allocation12], 0
      %s100 = sshll.u32 %s7, 4
      %s101 = int_to_ptr.hbm [resolvable:$true] %s100
      %s102 = sshll.u32 [#allocation13], 4
      %s103 = int_to_ptr.vmem [resolvable:$true] %s102
      %108 = dma.hbm_to_vmem [thread:$0]  %s101, 8192, %s103, [#allocation12], 128, 128, 8
    $region33: #{tpu_custom_call.1} parent=1 // pred_fallthru
      _
    // Predicated region
    $region34: #{tpu_custom_call.1} parent=1 // pred_check
      _
    $region35: #{tpu_custom_call.1} parent=1 // pred_check_branch
      %110 = sbr.rel (0) target = $region37
    $region36: #{tpu_custom_call.1} parent=1 // pred_region
      _
    $region37: #{tpu_custom_call.1} parent=1 // pred_fallthru
      _
    // Predicated region
    $region38: #{tpu_custom_call.1} parent=1 // pred_check
      _
    $region39: #{tpu_custom_call.1} parent=1 // pred_check_branch
      %112 = sbr.rel (0) target = $region41
    $region40: #{tpu_custom_call.1} parent=1 // pred_region
      %114 = dma.done [#allocation3], 128
    $region41: #{tpu_custom_call.1} parent=1 // pred_fallthru
      _
    // Predicated region
    $region42: #{tpu_custom_call.1} parent=1 // pred_check
      _
    $region43: #{tpu_custom_call.1} parent=1 // pred_check_branch
      %116 = sbr.rel (0) target = $region45
    $region44: #{tpu_custom_call.1} parent=1 // pred_region
      %118 = dma.done [#allocation6], 8192
    $region45: #{tpu_custom_call.1} parent=1 // pred_fallthru
      _
    // Predicated region
    $region46: #{tpu_custom_call.1} parent=1 // pred_check
      _
    $region47: #{tpu_custom_call.1} parent=1 // pred_check_branch
      %120 = sbr.rel (0) target = $region49
    $region48: #{tpu_custom_call.1} parent=1 // pred_region
      %122 = dma.done [#allocation6], 64
    $region49: #{tpu_custom_call.1} parent=1 // pred_fallthru
      _
    // Predicated region
    $region50: #{tpu_custom_call.1} parent=1 // pred_check
      _
    $region51: #{tpu_custom_call.1} parent=1 // pred_check_branch
      %124 = sbr.rel (0) target = $region53
    $region52: #{tpu_custom_call.1} parent=1 // pred_region
      %126 = dma.done [#allocation9], 4096
    $region53: #{tpu_custom_call.1} parent=1 // pred_fallthru
      _
    // Predicated region
    $region54: #{tpu_custom_call.1} parent=1 // pred_check
      _
    $region55: #{tpu_custom_call.1} parent=1 // pred_check_branch
      %128 = sbr.rel (0) target = $region57
    $region56: #{tpu_custom_call.1} parent=1 // pred_region
      %130 = dma.done [#allocation9], 16
    $region57: #{tpu_custom_call.1} parent=1 // pred_fallthru
      _
    // Predicated region
    $region58: #{tpu_custom_call.1} parent=1 // pred_check
      _
    $region59: #{tpu_custom_call.1} parent=1 // pred_check_branch
      %132 = sbr.rel (0) target = $region61
    $region60: #{tpu_custom_call.1} parent=1 // pred_region
      %134 = dma.done [#allocation12], 4096
    $region61: #{tpu_custom_call.1} parent=1 // pred_fallthru
      _
    // Predicated region
    $region62: #{tpu_custom_call.1} parent=1 // pred_check
      _
    $region63: #{tpu_custom_call.1} parent=1 // pred_check_branch
      %136 = sbr.rel (0) target = $region65
    $region64: #{tpu_custom_call.1} parent=1 // pred_region
      %138 = dma.done [#allocation12], 8192
    $region65: #{tpu_custom_call.1} parent=1 // pred_fallthru
      _
    %v139 = vld [vmem:[#allocation2] sm:$0xff]
    %v140 = vld [vmem:[#allocation5] sm:$0xff]
    %v141 = vld [vmem:[#allocation5 + $0x8] sm:$0xff]
    %v142 = vld [vmem:[#allocation5 + $0x10] sm:$0xff]
    %v143 = vld [vmem:[#allocation5 + $0x18] sm:$0xff]
    %v144 = vld [vmem:[#allocation5 + $0x20] sm:$0xff]
    %v145 = vld [vmem:[#allocation5 + $0x28] sm:$0xff]
    %v146 = vld [vmem:[#allocation5 + $0x30] sm:$0xff]
    %v147 = vld [vmem:[#allocation5 + $0x38] sm:$0xff]
    %v148 = vld [vmem:[#allocation5 + $0x40] sm:$0xff]
    %v149 = vld [vmem:[#allocation5 + $0x48] sm:$0xff]
    %v150 = vld [vmem:[#allocation5 + $0x50] sm:$0xff]
    %v151 = vld [vmem:[#allocation5 + $0x58] sm:$0xff]
    %v152 = vld [vmem:[#allocation5 + $0x60] sm:$0xff]
    %v153 = vld [vmem:[#allocation5 + $0x68] sm:$0xff]
    %v154 = vld [vmem:[#allocation5 + $0x70] sm:$0xff]
    %v155 = vld [vmem:[#allocation5 + $0x78] sm:$0xff]
    %v156 = vld [vmem:[#allocation5 + $0x80] sm:$0xff]
    %v157 = vld [vmem:[#allocation5 + $0x88] sm:$0xff]
    %v158 = vld [vmem:[#allocation5 + $0x90] sm:$0xff]
    %v159 = vld [vmem:[#allocation5 + $0x98] sm:$0xff]
    %v160 = vld [vmem:[#allocation5 + $0xa0] sm:$0xff]
    %v161 = vld [vmem:[#allocation5 + $0xa8] sm:$0xff]
    %v162 = vld [vmem:[#allocation5 + $0xb0] sm:$0xff]
    %v163 = vld [vmem:[#allocation5 + $0xb8] sm:$0xff]
    %v164 = vld [vmem:[#allocation5 + $0xc0] sm:$0xff]
    %v165 = vld [vmem:[#allocation5 + $0xc8] sm:$0xff]
    %v166 = vld [vmem:[#allocation5 + $0xd0] sm:$0xff]
    %v167 = vld [vmem:[#allocation5 + $0xd8] sm:$0xff]
    %v168 = vld [vmem:[#allocation5 + $0xe0] sm:$0xff]
    %v169 = vld [vmem:[#allocation5 + $0xe8] sm:$0xff]
    %v170 = vld [vmem:[#allocation5 + $0xf0] sm:$0xff]
    %v171 = vld [vmem:[#allocation5 + $0xf8] sm:$0xff]
    %v172 = vld [vmem:[#allocation5 + $0x100] sm:$0xff]
    %v173 = vld [vmem:[#allocation5 + $0x108] sm:$0xff]
    %v174 = vld [vmem:[#allocation5 + $0x110] sm:$0xff]
    %v175 = vld [vmem:[#allocation5 + $0x118] sm:$0xff]
    %v176 = vld [vmem:[#allocation5 + $0x120] sm:$0xff]
    %v177 = vld [vmem:[#allocation5 + $0x128] sm:$0xff]
    %v178 = vld [vmem:[#allocation5 + $0x130] sm:$0xff]
    %v179 = vld [vmem:[#allocation5 + $0x138] sm:$0xff]
    %v180 = vld [vmem:[#allocation5 + $0x140] sm:$0xff]
    %v181 = vld [vmem:[#allocation5 + $0x148] sm:$0xff]
    %v182 = vld [vmem:[#allocation5 + $0x150] sm:$0xff]
    %v183 = vld [vmem:[#allocation5 + $0x158] sm:$0xff]
    %v184 = vld [vmem:[#allocation5 + $0x160] sm:$0xff]
    %v185 = vld [vmem:[#allocation5 + $0x168] sm:$0xff]
    %v186 = vld [vmem:[#allocation5 + $0x170] sm:$0xff]
    %v187 = vld [vmem:[#allocation5 + $0x178] sm:$0xff]
    %v188 = vld [vmem:[#allocation5 + $0x180] sm:$0xff]
    %v189 = vld [vmem:[#allocation5 + $0x188] sm:$0xff]
    %v190 = vld [vmem:[#allocation5 + $0x190] sm:$0xff]
    %v191 = vld [vmem:[#allocation5 + $0x198] sm:$0xff]
    %v192 = vld [vmem:[#allocation5 + $0x1a0] sm:$0xff]
    %v193 = vld [vmem:[#allocation5 + $0x1a8] sm:$0xff]
    %v194 = vld [vmem:[#allocation5 + $0x1b0] sm:$0xff]
    %v195 = vld [vmem:[#allocation5 + $0x1b8] sm:$0xff]
    %v196 = vld [vmem:[#allocation5 + $0x1c0] sm:$0xff]
    %v197 = vld [vmem:[#allocation5 + $0x1c8] sm:$0xff]
    %v198 = vld [vmem:[#allocation5 + $0x1d0] sm:$0xff]
    %v199 = vld [vmem:[#allocation5 + $0x1d8] sm:$0xff]
    %v200 = vld [vmem:[#allocation5 + $0x1e0] sm:$0xff]
    %v201 = vld [vmem:[#allocation5 + $0x1e8] sm:$0xff]
    %v202 = vld [vmem:[#allocation5 + $0x1f0] sm:$0xff]
    %v203 = vld [vmem:[#allocation5 + $0x1f8] sm:$0xff]
    %v204 = vld [vmem:[#allocation7] sm:$0xf]
    %v206 = vperm.slane %v204, 0
    %v207 = vperm.slane %v204, 1
    %v208 = vperm.slane %v204, 2
    %v209 = vperm.slane %v204, 3
    %v215 = vunpack.c.l.b16 %v139
    %v216 = vunpack.c.h.b16 %v139
    %v217 = vpack.c.b16 %v215, %v215
    %v218 = vpack.c.b16 %v216, %v216
    %v285 = vunpack.c.l.b16 %v140
    %v286 = vunpack.c.h.b16 %v140
    %v287 = vunpack.c.l.b16 %v141
    %v288 = vunpack.c.h.b16 %v141
    %v289 = vunpack.c.l.b16 %v142
    %v290 = vunpack.c.h.b16 %v142
    %v291 = vunpack.c.l.b16 %v143
    %v292 = vunpack.c.h.b16 %v143
    %v293 = vunpack.c.l.b16 %v144
    %v294 = vunpack.c.h.b16 %v144
    %v295 = vunpack.c.l.b16 %v145
    %v296 = vunpack.c.h.b16 %v145
    %v297 = vunpack.c.l.b16 %v146
    %v298 = vunpack.c.h.b16 %v146
    %v299 = vunpack.c.l.b16 %v147
    %v300 = vunpack.c.h.b16 %v147
    %v301 = vunpack.c.l.b16 %v148
    %v302 = vunpack.c.h.b16 %v148
    %v303 = vunpack.c.l.b16 %v149
    %v304 = vunpack.c.h.b16 %v149
    %v305 = vunpack.c.l.b16 %v150
    %v306 = vunpack.c.h.b16 %v150
    %v307 = vunpack.c.l.b16 %v151
    %v308 = vunpack.c.h.b16 %v151
    %v309 = vunpack.c.l.b16 %v152
    %v310 = vunpack.c.h.b16 %v152
    %v311 = vunpack.c.l.b16 %v153
    %v312 = vunpack.c.h.b16 %v153
    %v313 = vunpack.c.l.b16 %v154
    %v314 = vunpack.c.h.b16 %v154
    %v315 = vunpack.c.l.b16 %v155
    %v316 = vunpack.c.h.b16 %v155
    %v317 = vunpack.c.l.b16 %v156
    %v318 = vunpack.c.h.b16 %v156
    %v319 = vunpack.c.l.b16 %v157
    %v320 = vunpack.c.h.b16 %v157
    %v321 = vunpack.c.l.b16 %v158
    %v322 = vunpack.c.h.b16 %v158
    %v323 = vunpack.c.l.b16 %v159
    %v324 = vunpack.c.h.b16 %v159
    %v325 = vunpack.c.l.b16 %v160
    %v326 = vunpack.c.h.b16 %v160
    %v327 = vunpack.c.l.b16 %v161
    %v328 = vunpack.c.h.b16 %v161
    %v329 = vunpack.c.l.b16 %v162
    %v330 = vunpack.c.h.b16 %v162
    %v331 = vunpack.c.l.b16 %v163
    %v332 = vunpack.c.h.b16 %v163
    %v333 = vunpack.c.l.b16 %v164
    %v334 = vunpack.c.h.b16 %v164
    %v335 = vunpack.c.l.b16 %v165
    %v336 = vunpack.c.h.b16 %v165
    %v337 = vunpack.c.l.b16 %v166
    %v338 = vunpack.c.h.b16 %v166
    %v339 = vunpack.c.l.b16 %v167
    %v340 = vunpack.c.h.b16 %v167
    %v341 = vunpack.c.l.b16 %v168
    %v342 = vunpack.c.h.b16 %v168
    %v343 = vunpack.c.l.b16 %v169
    %v344 = vunpack.c.h.b16 %v169
    %v345 = vunpack.c.l.b16 %v170
    %v346 = vunpack.c.h.b16 %v170
    %v347 = vunpack.c.l.b16 %v171
    %v348 = vunpack.c.h.b16 %v171
    %v349 = vunpack.c.l.b16 %v172
    %v350 = vunpack.c.h.b16 %v172
    %v351 = vunpack.c.l.b16 %v173
    %v352 = vunpack.c.h.b16 %v173
    %v353 = vunpack.c.l.b16 %v174
    %v354 = vunpack.c.h.b16 %v174
    %v355 = vunpack.c.l.b16 %v175
    %v356 = vunpack.c.h.b16 %v175
    %v357 = vunpack.c.l.b16 %v176
    %v358 = vunpack.c.h.b16 %v176
    %v359 = vunpack.c.l.b16 %v177
    %v360 = vunpack.c.h.b16 %v177
    %v361 = vunpack.c.l.b16 %v178
    %v362 = vunpack.c.h.b16 %v178
    %v363 = vunpack.c.l.b16 %v179
    %v364 = vunpack.c.h.b16 %v179
    %v365 = vunpack.c.l.b16 %v180
    %v366 = vunpack.c.h.b16 %v180
    %v367 = vunpack.c.l.b16 %v181
    %v368 = vunpack.c.h.b16 %v181
    %v369 = vunpack.c.l.b16 %v182
    %v370 = vunpack.c.h.b16 %v182
    %v371 = vunpack.c.l.b16 %v183
    %v372 = vunpack.c.h.b16 %v183
    %v373 = vunpack.c.l.b16 %v184
    %v374 = vunpack.c.h.b16 %v184
    %v375 = vunpack.c.l.b16 %v185
    %v376 = vunpack.c.h.b16 %v185
    %v377 = vunpack.c.l.b16 %v186
    %v378 = vunpack.c.h.b16 %v186
    %v379 = vunpack.c.l.b16 %v187
    %v380 = vunpack.c.h.b16 %v187
    %v381 = vunpack.c.l.b16 %v188
    %v382 = vunpack.c.h.b16 %v188
    %v383 = vunpack.c.l.b16 %v189
    %v384 = vunpack.c.h.b16 %v189
    %v385 = vunpack.c.l.b16 %v190
    %v386 = vunpack.c.h.b16 %v190
    %v387 = vunpack.c.l.b16 %v191
    %v388 = vunpack.c.h.b16 %v191
    %v389 = vunpack.c.l.b16 %v192
    %v390 = vunpack.c.h.b16 %v192
    %v391 = vunpack.c.l.b16 %v193
    %v392 = vunpack.c.h.b16 %v193
    %v393 = vunpack.c.l.b16 %v194
    %v394 = vunpack.c.h.b16 %v194
    %v395 = vunpack.c.l.b16 %v195
    %v396 = vunpack.c.h.b16 %v195
    %v397 = vunpack.c.l.b16 %v196
    %v398 = vunpack.c.h.b16 %v196
    %v399 = vunpack.c.l.b16 %v197
    %v400 = vunpack.c.h.b16 %v197
    %v401 = vunpack.c.l.b16 %v198
    %v402 = vunpack.c.h.b16 %v198
    %v403 = vunpack.c.l.b16 %v199
    %v404 = vunpack.c.h.b16 %v199
    %v405 = vunpack.c.l.b16 %v200
    %v406 = vunpack.c.h.b16 %v200
    %v407 = vunpack.c.l.b16 %v201
    %v408 = vunpack.c.h.b16 %v201
    %v409 = vunpack.c.l.b16 %v202
    %v410 = vunpack.c.h.b16 %v202
    %v411 = vunpack.c.l.b16 %v203
    %v412 = vunpack.c.h.b16 %v203
    %v413 = vpack.c.b16 %v289, %v285
    %v414 = vpack.c.b16 %v290, %v286
    %v415 = vpack.c.b16 %v291, %v287
    %v416 = vpack.c.b16 %v292, %v288
    %v417 = vpack.c.b16 %v297, %v293
    %v418 = vpack.c.b16 %v298, %v294
    %v419 = vpack.c.b16 %v299, %v295
    %v420 = vpack.c.b16 %v300, %v296
    %v421 = vpack.c.b16 %v305, %v301
    %v422 = vpack.c.b16 %v306, %v302
    %v423 = vpack.c.b16 %v307, %v303
    %v424 = vpack.c.b16 %v308, %v304
    %v425 = vpack.c.b16 %v313, %v309
    %v426 = vpack.c.b16 %v314, %v310
    %v427 = vpack.c.b16 %v315, %v311
    %v428 = vpack.c.b16 %v316, %v312
    %v429 = vpack.c.b16 %v321, %v317
    %v430 = vpack.c.b16 %v322, %v318
    %v431 = vpack.c.b16 %v323, %v319
    %v432 = vpack.c.b16 %v324, %v320
    %v433 = vpack.c.b16 %v329, %v325
    %v434 = vpack.c.b16 %v330, %v326
    %v435 = vpack.c.b16 %v331, %v327
    %v436 = vpack.c.b16 %v332, %v328
    %v437 = vpack.c.b16 %v337, %v333
    %v438 = vpack.c.b16 %v338, %v334
    %v439 = vpack.c.b16 %v339, %v335
    %v440 = vpack.c.b16 %v340, %v336
    %v441 = vpack.c.b16 %v345, %v341
    %v442 = vpack.c.b16 %v346, %v342
    %v443 = vpack.c.b16 %v347, %v343
    %v444 = vpack.c.b16 %v348, %v344
    %v445 = vpack.c.b16 %v353, %v349
    %v446 = vpack.c.b16 %v354, %v350
    %v447 = vpack.c.b16 %v355, %v351
    %v448 = vpack.c.b16 %v356, %v352
    %v449 = vpack.c.b16 %v361, %v357
    %v450 = vpack.c.b16 %v362, %v358
    %v451 = vpack.c.b16 %v363, %v359
    %v452 = vpack.c.b16 %v364, %v360
    %v453 = vpack.c.b16 %v369, %v365
    %v454 = vpack.c.b16 %v370, %v366
    %v455 = vpack.c.b16 %v371, %v367
    %v456 = vpack.c.b16 %v372, %v368
    %v457 = vpack.c.b16 %v377, %v373
    %v458 = vpack.c.b16 %v378, %v374
    %v459 = vpack.c.b16 %v379, %v375
    %v460 = vpack.c.b16 %v380, %v376
    %v461 = vpack.c.b16 %v385, %v381
    %v462 = vpack.c.b16 %v386, %v382
    %v463 = vpack.c.b16 %v387, %v383
    %v464 = vpack.c.b16 %v388, %v384
    %v465 = vpack.c.b16 %v393, %v389
    %v466 = vpack.c.b16 %v394, %v390
    %v467 = vpack.c.b16 %v395, %v391
    %v468 = vpack.c.b16 %v396, %v392
    %v469 = vpack.c.b16 %v401, %v397
    %v470 = vpack.c.b16 %v402, %v398
    %v471 = vpack.c.b16 %v403, %v399
    %v472 = vpack.c.b16 %v404, %v400
    %v473 = vpack.c.b16 %v409, %v405
    %v474 = vpack.c.b16 %v410, %v406
    %v475 = vpack.c.b16 %v411, %v407
    %v476 = vpack.c.b16 %v412, %v408
    %541 = vmatpush.bf16.msra.mxu0 %v441
    %542 = vmatpush.bf16.msra.mxu0 %v437
    %543 = vmatpush.bf16.msra.mxu0 %v433
    %544 = vmatpush.bf16.msra.mxu0 %v429
    %545 = vmatpush.bf16.msra.mxu0 %v425
    %546 = vmatpush.bf16.msra.mxu0 %v421
    %547 = vmatpush.bf16.msra.mxu0 %v417
    %548 = vmatpush.bf16.msra.mxu0 %v413
    %549 = vmatmul.bf16.gmra.mxu0 %v217
    %v550 = vpop.f32.mrf.mxu0
    %v551 = vadd.f32 %v206, %v550
    %v552 = vpop.f32.mrf.mxu0
    %553 = vdwg.mxu0
    %554 = vmatpush.bf16.msra.mxu0 %v473
    %555 = vmatpush.bf16.msra.mxu0 %v469
    %556 = vmatpush.bf16.msra.mxu0 %v465
    %557 = vmatpush.bf16.msra.mxu0 %v461
    %558 = vmatpush.bf16.msra.mxu0 %v457
    %559 = vmatpush.bf16.msra.mxu0 %v453
    %560 = vmatpush.bf16.msra.mxu0 %v449
    %561 = vmatpush.bf16.msra.mxu0 %v445
    %562 = vmatmul.bf16.gmra.mxu0 %v218
    %v563 = vpop.f32.mrf.mxu0
    %v564 = vadd.f32 %v551, %v563
    %v565 = vpop.f32.mrf.mxu0
    %566 = vdwg.mxu0
    %567 = vmatpush.bf16.msra.mxu0 %v442
    %568 = vmatpush.bf16.msra.mxu0 %v438
    %569 = vmatpush.bf16.msra.mxu0 %v434
    %570 = vmatpush.bf16.msra.mxu0 %v430
    %571 = vmatpush.bf16.msra.mxu0 %v426
    %572 = vmatpush.bf16.msra.mxu0 %v422
    %573 = vmatpush.bf16.msra.mxu0 %v418
    %574 = vmatpush.bf16.msra.mxu0 %v414
    %575 = vmatmul.bf16.gmra.mxu0 %v217
    %v576 = vpop.f32.mrf.mxu0
    %v577 = vadd.f32 %v207, %v576
    %v578 = vpop.f32.mrf.mxu0
    %579 = vdwg.mxu0
    %580 = vmatpush.bf16.msra.mxu0 %v474
    %581 = vmatpush.bf16.msra.mxu0 %v470
    %582 = vmatpush.bf16.msra.mxu0 %v466
    %583 = vmatpush.bf16.msra.mxu0 %v462
    %584 = vmatpush.bf16.msra.mxu0 %v458
    %585 = vmatpush.bf16.msra.mxu0 %v454
    %586 = vmatpush.bf16.msra.mxu0 %v450
    %587 = vmatpush.bf16.msra.mxu0 %v446
    %588 = vmatmul.bf16.gmra.mxu0 %v218
    %v589 = vpop.f32.mrf.mxu0
    %v590 = vadd.f32 %v577, %v589
    %v591 = vpop.f32.mrf.mxu0
    %592 = vdwg.mxu0
    %593 = vmatpush.bf16.msra.mxu0 %v443
    %594 = vmatpush.bf16.msra.mxu0 %v439
    %595 = vmatpush.bf16.msra.mxu0 %v435
    %596 = vmatpush.bf16.msra.mxu0 %v431
    %597 = vmatpush.bf16.msra.mxu0 %v427
    %598 = vmatpush.bf16.msra.mxu0 %v423
    %599 = vmatpush.bf16.msra.mxu0 %v419
    %600 = vmatpush.bf16.msra.mxu0 %v415
    %601 = vmatmul.bf16.gmra.mxu0 %v217
    %v602 = vpop.f32.mrf.mxu0
    %v603 = vadd.f32 %v208, %v602
    %v604 = vpop.f32.mrf.mxu0
    %605 = vdwg.mxu0
    %606 = vmatpush.bf16.msra.mxu0 %v475
    %607 = vmatpush.bf16.msra.mxu0 %v471
    %608 = vmatpush.bf16.msra.mxu0 %v467
    %609 = vmatpush.bf16.msra.mxu0 %v463
    %610 = vmatpush.bf16.msra.mxu0 %v459
    %611 = vmatpush.bf16.msra.mxu0 %v455
    %612 = vmatpush.bf16.msra.mxu0 %v451
    %613 = vmatpush.bf16.msra.mxu0 %v447
    %614 = vmatmul.bf16.gmra.mxu0 %v218
    %v615 = vpop.f32.mrf.mxu0
    %v616 = vadd.f32 %v603, %v615
    %v617 = vpop.f32.mrf.mxu0
    %618 = vdwg.mxu0
    %619 = vmatpush.bf16.msra.mxu0 %v444
    %620 = vmatpush.bf16.msra.mxu0 %v440
    %621 = vmatpush.bf16.msra.mxu0 %v436
    %622 = vmatpush.bf16.msra.mxu0 %v432
    %623 = vmatpush.bf16.msra.mxu0 %v428
    %624 = vmatpush.bf16.msra.mxu0 %v424
    %625 = vmatpush.bf16.msra.mxu0 %v420
    %626 = vmatpush.bf16.msra.mxu0 %v416
    %627 = vmatmul.bf16.gmra.mxu0 %v217
    %v628 = vpop.f32.mrf.mxu0
    %v629 = vadd.f32 %v209, %v628
    %v630 = vpop.f32.mrf.mxu0
    %631 = vdwg.mxu0
    %632 = vmatpush.bf16.msra.mxu0 %v476
    %633 = vmatpush.bf16.msra.mxu0 %v472
    %634 = vmatpush.bf16.msra.mxu0 %v468
    %635 = vmatpush.bf16.msra.mxu0 %v464
    %636 = vmatpush.bf16.msra.mxu0 %v460
    %637 = vmatpush.bf16.msra.mxu0 %v456
    %638 = vmatpush.bf16.msra.mxu0 %v452
    %639 = vmatpush.bf16.msra.mxu0 %v448
    %640 = vmatmul.bf16.gmra.mxu0 %v218
    %v641 = vpop.f32.mrf.mxu0
    %v642 = vadd.f32 %v629, %v641
    %v643 = vpop.f32.mrf.mxu0
    %644 = vdwg.mxu0
    %v645 = vmax.f32 %v564, 0.0
    %v646 = vmax.f32 %v590, 0.0
    %v647 = vmax.f32 %v616, 0.0
    %v648 = vmax.f32 %v642, 0.0
    %v649 = vpack.c.bf16 %v645, %v645
    %v650 = vpack.c.bf16 %v646, %v646
    %v651 = vpack.c.bf16 %v647, %v647
    %v652 = vpack.c.bf16 %v648, %v648
    %v653 = vld [vmem:[#allocation8] sm:$0xf]
    %v654 = vld [vmem:[#allocation8 + $0x4] sm:$0xf]
    %v655 = vld [vmem:[#allocation8 + $0x8] sm:$0xf]
    %v656 = vld [vmem:[#allocation8 + $0xc] sm:$0xf]
    %v657 = vld [vmem:[#allocation8 + $0x10] sm:$0xf]
    %v658 = vld [vmem:[#allocation8 + $0x14] sm:$0xf]
    %v659 = vld [vmem:[#allocation8 + $0x18] sm:$0xf]
    %v660 = vld [vmem:[#allocation8 + $0x1c] sm:$0xf]
    %v661 = vld [vmem:[#allocation8 + $0x20] sm:$0xf]
    %v662 = vld [vmem:[#allocation8 + $0x24] sm:$0xf]
    %v663 = vld [vmem:[#allocation8 + $0x28] sm:$0xf]
    %v664 = vld [vmem:[#allocation8 + $0x2c] sm:$0xf]
    %v665 = vld [vmem:[#allocation8 + $0x30] sm:$0xf]
    %v666 = vld [vmem:[#allocation8 + $0x34] sm:$0xf]
    %v667 = vld [vmem:[#allocation8 + $0x38] sm:$0xf]
    %v668 = vld [vmem:[#allocation8 + $0x3c] sm:$0xf]
    %v669 = vld [vmem:[#allocation8 + $0x40] sm:$0xf]
    %v670 = vld [vmem:[#allocation8 + $0x44] sm:$0xf]
    %v671 = vld [vmem:[#allocation8 + $0x48] sm:$0xf]
    %v672 = vld [vmem:[#allocation8 + $0x4c] sm:$0xf]
    %v673 = vld [vmem:[#allocation8 + $0x50] sm:$0xf]
    %v674 = vld [vmem:[#allocation8 + $0x54] sm:$0xf]
    %v675 = vld [vmem:[#allocation8 + $0x58] sm:$0xf]
    %v676 = vld [vmem:[#allocation8 + $0x5c] sm:$0xf]
    %v677 = vld [vmem:[#allocation8 + $0x60] sm:$0xf]
    %v678 = vld [vmem:[#allocation8 + $0x64] sm:$0xf]
    %v679 = vld [vmem:[#allocation8 + $0x68] sm:$0xf]
    %v680 = vld [vmem:[#allocation8 + $0x6c] sm:$0xf]
    %v681 = vld [vmem:[#allocation8 + $0x70] sm:$0xf]
    %v682 = vld [vmem:[#allocation8 + $0x74] sm:$0xf]
    %v683 = vld [vmem:[#allocation8 + $0x78] sm:$0xf]
    %v684 = vld [vmem:[#allocation8 + $0x7c] sm:$0xf]
    %v685 = vld [vmem:[#allocation8 + $0x80] sm:$0xf]
    %v686 = vld [vmem:[#allocation8 + $0x84] sm:$0xf]
    %v687 = vld [vmem:[#allocation8 + $0x88] sm:$0xf]
    %v688 = vld [vmem:[#allocation8 + $0x8c] sm:$0xf]
    %v689 = vld [vmem:[#allocation8 + $0x90] sm:$0xf]
    %v690 = vld [vmem:[#allocation8 + $0x94] sm:$0xf]
    %v691 = vld [vmem:[#allocation8 + $0x98] sm:$0xf]
    %v692 = vld [vmem:[#allocation8 + $0x9c] sm:$0xf]
    %v693 = vld [vmem:[#allocation8 + $0xa0] sm:$0xf]
    %v694 = vld [vmem:[#allocation8 + $0xa4] sm:$0xf]
    %v695 = vld [vmem:[#allocation8 + $0xa8] sm:$0xf]
    %v696 = vld [vmem:[#allocation8 + $0xac] sm:$0xf]
    %v697 = vld [vmem:[#allocation8 + $0xb0] sm:$0xf]
    %v698 = vld [vmem:[#allocation8 + $0xb4] sm:$0xf]
    %v699 = vld [vmem:[#allocation8 + $0xb8] sm:$0xf]
    %v700 = vld [vmem:[#allocation8 + $0xbc] sm:$0xf]
    %v701 = vld [vmem:[#allocation8 + $0xc0] sm:$0xf]
    %v702 = vld [vmem:[#allocation8 + $0xc4] sm:$0xf]
    %v703 = vld [vmem:[#allocation8 + $0xc8] sm:$0xf]
    %v704 = vld [vmem:[#allocation8 + $0xcc] sm:$0xf]
    %v705 = vld [vmem:[#allocation8 + $0xd0] sm:$0xf]
    %v706 = vld [vmem:[#allocation8 + $0xd4] sm:$0xf]
    %v707 = vld [vmem:[#allocation8 + $0xd8] sm:$0xf]
    %v708 = vld [vmem:[#allocation8 + $0xdc] sm:$0xf]
    %v709 = vld [vmem:[#allocation8 + $0xe0] sm:$0xf]
    %v710 = vld [vmem:[#allocation8 + $0xe4] sm:$0xf]
    %v711 = vld [vmem:[#allocation8 + $0xe8] sm:$0xf]
    %v712 = vld [vmem:[#allocation8 + $0xec] sm:$0xf]
    %v713 = vld [vmem:[#allocation8 + $0xf0] sm:$0xf]
    %v714 = vld [vmem:[#allocation8 + $0xf4] sm:$0xf]
    %v715 = vld [vmem:[#allocation8 + $0xf8] sm:$0xf]
    %v716 = vld [vmem:[#allocation8 + $0xfc] sm:$0xf]
    %v717 = vld [vmem:[#allocation10] sm:$0x1]
    %v719 = vperm.slane %v717, 0
    %v785 = vunpack.c.l.b16 %v653
    %v786 = vunpack.c.l.b16 %v654
    %v787 = vunpack.c.l.b16 %v655
    %v788 = vunpack.c.l.b16 %v656
    %v789 = vunpack.c.l.b16 %v657
    %v790 = vunpack.c.l.b16 %v658
    %v791 = vunpack.c.l.b16 %v659
    %v792 = vunpack.c.l.b16 %v660
    %v793 = vunpack.c.l.b16 %v661
    %v794 = vunpack.c.l.b16 %v662
    %v795 = vunpack.c.l.b16 %v663
    %v796 = vunpack.c.l.b16 %v664
    %v797 = vunpack.c.l.b16 %v665
    %v798 = vunpack.c.l.b16 %v666
    %v799 = vunpack.c.l.b16 %v667
    %v800 = vunpack.c.l.b16 %v668
    %v801 = vunpack.c.l.b16 %v669
    %v802 = vunpack.c.l.b16 %v670
    %v803 = vunpack.c.l.b16 %v671
    %v804 = vunpack.c.l.b16 %v672
    %v805 = vunpack.c.l.b16 %v673
    %v806 = vunpack.c.l.b16 %v674
    %v807 = vunpack.c.l.b16 %v675
    %v808 = vunpack.c.l.b16 %v676
    %v809 = vunpack.c.l.b16 %v677
    %v810 = vunpack.c.l.b16 %v678
    %v811 = vunpack.c.l.b16 %v679
    %v812 = vunpack.c.l.b16 %v680
    %v813 = vunpack.c.l.b16 %v681
    %v814 = vunpack.c.l.b16 %v682
    %v815 = vunpack.c.l.b16 %v683
    %v816 = vunpack.c.l.b16 %v684
    %v817 = vunpack.c.l.b16 %v685
    %v818 = vunpack.c.l.b16 %v686
    %v819 = vunpack.c.l.b16 %v687
    %v820 = vunpack.c.l.b16 %v688
    %v821 = vunpack.c.l.b16 %v689
    %v822 = vunpack.c.l.b16 %v690
    %v823 = vunpack.c.l.b16 %v691
    %v824 = vunpack.c.l.b16 %v692
    %v825 = vunpack.c.l.b16 %v693
    %v826 = vunpack.c.l.b16 %v694
    %v827 = vunpack.c.l.b16 %v695
    %v828 = vunpack.c.l.b16 %v696
    %v829 = vunpack.c.l.b16 %v697
    %v830 = vunpack.c.l.b16 %v698
    %v831 = vunpack.c.l.b16 %v699
    %v832 = vunpack.c.l.b16 %v700
    %v833 = vunpack.c.l.b16 %v701
    %v834 = vunpack.c.l.b16 %v702
    %v835 = vunpack.c.l.b16 %v703
    %v836 = vunpack.c.l.b16 %v704
    %v837 = vunpack.c.l.b16 %v705
    %v838 = vunpack.c.l.b16 %v706
    %v839 = vunpack.c.l.b16 %v707
    %v840 = vunpack.c.l.b16 %v708
    %v841 = vunpack.c.l.b16 %v709
    %v842 = vunpack.c.l.b16 %v710
    %v843 = vunpack.c.l.b16 %v711
    %v844 = vunpack.c.l.b16 %v712
    %v845 = vunpack.c.l.b16 %v713
    %v846 = vunpack.c.l.b16 %v714
    %v847 = vunpack.c.l.b16 %v715
    %v848 = vunpack.c.l.b16 %v716
    %v849 = vpack.c.b16 %v786, %v785
    %v850 = vpack.c.b16 %v788, %v787
    %v851 = vpack.c.b16 %v790, %v789
    %v852 = vpack.c.b16 %v792, %v791
    %v853 = vpack.c.b16 %v794, %v793
    %v854 = vpack.c.b16 %v796, %v795
    %v855 = vpack.c.b16 %v798, %v797
    %v856 = vpack.c.b16 %v800, %v799
    %v857 = vpack.c.b16 %v802, %v801
    %v858 = vpack.c.b16 %v804, %v803
    %v859 = vpack.c.b16 %v806, %v805
    %v860 = vpack.c.b16 %v808, %v807
    %v861 = vpack.c.b16 %v810, %v809
    %v862 = vpack.c.b16 %v812, %v811
    %v863 = vpack.c.b16 %v814, %v813
    %v864 = vpack.c.b16 %v816, %v815
    %v865 = vpack.c.b16 %v818, %v817
    %v866 = vpack.c.b16 %v820, %v819
    %v867 = vpack.c.b16 %v822, %v821
    %v868 = vpack.c.b16 %v824, %v823
    %v869 = vpack.c.b16 %v826, %v825
    %v870 = vpack.c.b16 %v828, %v827
    %v871 = vpack.c.b16 %v830, %v829
    %v872 = vpack.c.b16 %v832, %v831
    %v873 = vpack.c.b16 %v834, %v833
    %v874 = vpack.c.b16 %v836, %v835
    %v875 = vpack.c.b16 %v838, %v837
    %v876 = vpack.c.b16 %v840, %v839
    %v877 = vpack.c.b16 %v842, %v841
    %v878 = vpack.c.b16 %v844, %v843
    %v879 = vpack.c.b16 %v846, %v845
    %v880 = vpack.c.b16 %v848, %v847
    %913 = vmatpush.bf16.msra.mxu0 %v856
    %914 = vmatpush.bf16.msra.mxu0 %v855
    %915 = vmatpush.bf16.msra.mxu0 %v854
    %916 = vmatpush.bf16.msra.mxu0 %v853
    %917 = vmatpush.bf16.msra.mxu0 %v852
    %918 = vmatpush.bf16.msra.mxu0 %v851
    %919 = vmatpush.bf16.msra.mxu0 %v850
    %920 = vmatpush.bf16.msra.mxu0 %v849
    %921 = vmatmul.bf16.gmra.mxu0 %v649
    %v922 = vpop.f32.mrf.mxu0
    %v923 = vadd.f32 %v719, %v922
    %v924 = vpop.f32.mrf.mxu0
    %925 = vdwg.mxu0
    %926 = vmatpush.bf16.msra.mxu0 %v864
    %927 = vmatpush.bf16.msra.mxu0 %v863
    %928 = vmatpush.bf16.msra.mxu0 %v862
    %929 = vmatpush.bf16.msra.mxu0 %v861
    %930 = vmatpush.bf16.msra.mxu0 %v860
    %931 = vmatpush.bf16.msra.mxu0 %v859
    %932 = vmatpush.bf16.msra.mxu0 %v858
    %933 = vmatpush.bf16.msra.mxu0 %v857
    %934 = vmatmul.bf16.gmra.mxu0 %v650
    %v935 = vpop.f32.mrf.mxu0
    %v936 = vadd.f32 %v923, %v935
    %v937 = vpop.f32.mrf.mxu0
    %938 = vdwg.mxu0
    %939 = vmatpush.bf16.msra.mxu0 %v872
    %940 = vmatpush.bf16.msra.mxu0 %v871
    %941 = vmatpush.bf16.msra.mxu0 %v870
    %942 = vmatpush.bf16.msra.mxu0 %v869
    %943 = vmatpush.bf16.msra.mxu0 %v868
    %944 = vmatpush.bf16.msra.mxu0 %v867
    %945 = vmatpush.bf16.msra.mxu0 %v866
    %946 = vmatpush.bf16.msra.mxu0 %v865
    %947 = vmatmul.bf16.gmra.mxu0 %v651
    %v948 = vpop.f32.mrf.mxu0
    %v949 = vadd.f32 %v936, %v948
    %v950 = vpop.f32.mrf.mxu0
    %951 = vdwg.mxu0
    %952 = vmatpush.bf16.msra.mxu0 %v880
    %953 = vmatpush.bf16.msra.mxu0 %v879
    %954 = vmatpush.bf16.msra.mxu0 %v878
    %955 = vmatpush.bf16.msra.mxu0 %v877
    %956 = vmatpush.bf16.msra.mxu0 %v876
    %957 = vmatpush.bf16.msra.mxu0 %v875
    %958 = vmatpush.bf16.msra.mxu0 %v874
    %959 = vmatpush.bf16.msra.mxu0 %v873
    %960 = vmatmul.bf16.gmra.mxu0 %v652
    %v961 = vpop.f32.mrf.mxu0
    %v962 = vadd.f32 %v949, %v961
    %v963 = vpop.f32.mrf.mxu0
    %964 = vdwg.mxu0
    %965 = vst [vmem:[#allocation15] sm:$0xff] %v962
    %v966 = vpack.c.bf16 %v962, %v962
    %v967 = vld [vmem:[#allocation11] sm:$0xff]
    %v968 = vld [vmem:[#allocation11 + $0x8] sm:$0xff]
    %v969 = vld [vmem:[#allocation11 + $0x10] sm:$0xff]
    %v970 = vld [vmem:[#allocation11 + $0x18] sm:$0xff]
    %v971 = vld [vmem:[#allocation11 + $0x20] sm:$0xff]
    %v972 = vld [vmem:[#allocation11 + $0x28] sm:$0xff]
    %v973 = vld [vmem:[#allocation11 + $0x30] sm:$0xff]
    %v974 = vld [vmem:[#allocation11 + $0x38] sm:$0xff]
    %v975 = vld [vmem:[#allocation11 + $0x40] sm:$0xff]
    %v976 = vld [vmem:[#allocation11 + $0x48] sm:$0xff]
    %v977 = vld [vmem:[#allocation11 + $0x50] sm:$0xff]
    %v978 = vld [vmem:[#allocation11 + $0x58] sm:$0xff]
    %v979 = vld [vmem:[#allocation11 + $0x60] sm:$0xff]
    %v980 = vld [vmem:[#allocation11 + $0x68] sm:$0xff]
    %v981 = vld [vmem:[#allocation11 + $0x70] sm:$0xff]
    %v982 = vld [vmem:[#allocation11 + $0x78] sm:$0xff]
    %v983 = vld [vmem:[#allocation11 + $0x80] sm:$0xff]
    %v984 = vld [vmem:[#allocation11 + $0x88] sm:$0xff]
    %v985 = vld [vmem:[#allocation11 + $0x90] sm:$0xff]
    %v986 = vld [vmem:[#allocation11 + $0x98] sm:$0xff]
    %v987 = vld [vmem:[#allocation11 + $0xa0] sm:$0xff]
    %v988 = vld [vmem:[#allocation11 + $0xa8] sm:$0xff]
    %v989 = vld [vmem:[#allocation11 + $0xb0] sm:$0xff]
    %v990 = vld [vmem:[#allocation11 + $0xb8] sm:$0xff]
    %v991 = vld [vmem:[#allocation11 + $0xc0] sm:$0xff]
    %v992 = vld [vmem:[#allocation11 + $0xc8] sm:$0xff]
    %v993 = vld [vmem:[#allocation11 + $0xd0] sm:$0xff]
    %v994 = vld [vmem:[#allocation11 + $0xd8] sm:$0xff]
    %v995 = vld [vmem:[#allocation11 + $0xe0] sm:$0xff]
    %v996 = vld [vmem:[#allocation11 + $0xe8] sm:$0xff]
    %v997 = vld [vmem:[#allocation11 + $0xf0] sm:$0xff]
    %v998 = vld [vmem:[#allocation11 + $0xf8] sm:$0xff]
    %v999 = vld [vmem:[%s6] sm:$0xf]
    %v1001 = vperm.slane %v999, 0
    %v1002 = vperm.slane %v999, 1
    %v1003 = vperm.slane %v999, 2
    %v1004 = vperm.slane %v999, 3
    %v1041 = vunpack.c.l.b16 %v967
    %v1042 = vunpack.c.h.b16 %v967
    %v1043 = vunpack.c.l.b16 %v968
    %v1044 = vunpack.c.h.b16 %v968
    %v1045 = vunpack.c.l.b16 %v969
    %v1046 = vunpack.c.h.b16 %v969
    %v1047 = vunpack.c.l.b16 %v970
    %v1048 = vunpack.c.h.b16 %v970
    %v1049 = vunpack.c.l.b16 %v971
    %v1050 = vunpack.c.h.b16 %v971
    %v1051 = vunpack.c.l.b16 %v972
    %v1052 = vunpack.c.h.b16 %v972
    %v1053 = vunpack.c.l.b16 %v973
    %v1054 = vunpack.c.h.b16 %v973
    %v1055 = vunpack.c.l.b16 %v974
    %v1056 = vunpack.c.h.b16 %v974
    %v1057 = vunpack.c.l.b16 %v975
    %v1058 = vunpack.c.h.b16 %v975
    %v1059 = vunpack.c.l.b16 %v976
    %v1060 = vunpack.c.h.b16 %v976
    %v1061 = vunpack.c.l.b16 %v977
    %v1062 = vunpack.c.h.b16 %v977
    %v1063 = vunpack.c.l.b16 %v978
    %v1064 = vunpack.c.h.b16 %v978
    %v1065 = vunpack.c.l.b16 %v979
    %v1066 = vunpack.c.h.b16 %v979
    %v1067 = vunpack.c.l.b16 %v980
    %v1068 = vunpack.c.h.b16 %v980
    %v1069 = vunpack.c.l.b16 %v981
    %v1070 = vunpack.c.h.b16 %v981
    %v1071 = vunpack.c.l.b16 %v982
    %v1072 = vunpack.c.h.b16 %v982
    %v1073 = vunpack.c.l.b16 %v983
    %v1074 = vunpack.c.h.b16 %v983
    %v1075 = vunpack.c.l.b16 %v984
    %v1076 = vunpack.c.h.b16 %v984
    %v1077 = vunpack.c.l.b16 %v985
    %v1078 = vunpack.c.h.b16 %v985
    %v1079 = vunpack.c.l.b16 %v986
    %v1080 = vunpack.c.h.b16 %v986
    %v1081 = vunpack.c.l.b16 %v987
    %v1082 = vunpack.c.h.b16 %v987
    %v1083 = vunpack.c.l.b16 %v988
    %v1084 = vunpack.c.h.b16 %v988
    %v1085 = vunpack.c.l.b16 %v989
    %v1086 = vunpack.c.h.b16 %v989
    %v1087 = vunpack.c.l.b16 %v990
    %v1088 = vunpack.c.h.b16 %v990
    %v1089 = vunpack.c.l.b16 %v991
    %v1090 = vunpack.c.h.b16 %v991
    %v1091 = vunpack.c.l.b16 %v992
    %v1092 = vunpack.c.h.b16 %v992
    %v1093 = vunpack.c.l.b16 %v993
    %v1094 = vunpack.c.h.b16 %v993
    %v1095 = vunpack.c.l.b16 %v994
    %v1096 = vunpack.c.h.b16 %v994
    %v1097 = vunpack.c.l.b16 %v995
    %v1098 = vunpack.c.h.b16 %v995
    %v1099 = vunpack.c.l.b16 %v996
    %v1100 = vunpack.c.h.b16 %v996
    %v1101 = vunpack.c.l.b16 %v997
    %v1102 = vunpack.c.h.b16 %v997
    %v1103 = vunpack.c.l.b16 %v998
    %v1104 = vunpack.c.h.b16 %v998
    %v1105 = vpack.c.b16 %v1045, %v1041
    %v1106 = vpack.c.b16 %v1046, %v1042
    %v1107 = vpack.c.b16 %v1047, %v1043
    %v1108 = vpack.c.b16 %v1048, %v1044
    %v1109 = vpack.c.b16 %v1053, %v1049
    %v1110 = vpack.c.b16 %v1054, %v1050
    %v1111 = vpack.c.b16 %v1055, %v1051
    %v1112 = vpack.c.b16 %v1056, %v1052
    %v1113 = vpack.c.b16 %v1061, %v1057
    %v1114 = vpack.c.b16 %v1062, %v1058
    %v1115 = vpack.c.b16 %v1063, %v1059
    %v1116 = vpack.c.b16 %v1064, %v1060
    %v1117 = vpack.c.b16 %v1069, %v1065
    %v1118 = vpack.c.b16 %v1070, %v1066
    %v1119 = vpack.c.b16 %v1071, %v1067
    %v1120 = vpack.c.b16 %v1072, %v1068
    %v1121 = vpack.c.b16 %v1077, %v1073
    %v1122 = vpack.c.b16 %v1078, %v1074
    %v1123 = vpack.c.b16 %v1079, %v1075
    %v1124 = vpack.c.b16 %v1080, %v1076
    %v1125 = vpack.c.b16 %v1085, %v1081
    %v1126 = vpack.c.b16 %v1086, %v1082
    %v1127 = vpack.c.b16 %v1087, %v1083
    %v1128 = vpack.c.b16 %v1088, %v1084
    %v1129 = vpack.c.b16 %v1093, %v1089
    %v1130 = vpack.c.b16 %v1094, %v1090
    %v1131 = vpack.c.b16 %v1095, %v1091
    %v1132 = vpack.c.b16 %v1096, %v1092
    %v1133 = vpack.c.b16 %v1101, %v1097
    %v1134 = vpack.c.b16 %v1102, %v1098
    %v1135 = vpack.c.b16 %v1103, %v1099
    %v1136 = vpack.c.b16 %v1104, %v1100
    %1169 = vmatpush.bf16.msra.mxu0 %v1133
    %1170 = vmatpush.bf16.msra.mxu0 %v1129
    %1171 = vmatpush.bf16.msra.mxu0 %v1125
    %1172 = vmatpush.bf16.msra.mxu0 %v1121
    %1173 = vmatpush.bf16.msra.mxu0 %v1117
    %1174 = vmatpush.bf16.msra.mxu0 %v1113
    %1175 = vmatpush.bf16.msra.mxu0 %v1109
    %1176 = vmatpush.bf16.msra.mxu0 %v1105
    %1177 = vmatmul.bf16.gmra.mxu0 %v966
    %v1178 = vpop.f32.mrf.mxu0
    %v1179 = vadd.f32 %v1001, %v1178
    %v1180 = vpop.f32.mrf.mxu0
    %1181 = vdwg.mxu0
    %1182 = vmatpush.bf16.msra.mxu0 %v1134
    %1183 = vmatpush.bf16.msra.mxu0 %v1130
    %1184 = vmatpush.bf16.msra.mxu0 %v1126
    %1185 = vmatpush.bf16.msra.mxu0 %v1122
    %1186 = vmatpush.bf16.msra.mxu0 %v1118
    %1187 = vmatpush.bf16.msra.mxu0 %v1114
    %1188 = vmatpush.bf16.msra.mxu0 %v1110
    %1189 = vmatpush.bf16.msra.mxu0 %v1106
    %1190 = vmatmul.bf16.gmra.mxu0 %v966
    %v1191 = vpop.f32.mrf.mxu0
    %v1192 = vadd.f32 %v1002, %v1191
    %v1193 = vpop.f32.mrf.mxu0
    %1194 = vdwg.mxu0
    %1195 = vmatpush.bf16.msra.mxu0 %v1135
    %1196 = vmatpush.bf16.msra.mxu0 %v1131
    %1197 = vmatpush.bf16.msra.mxu0 %v1127
    %1198 = vmatpush.bf16.msra.mxu0 %v1123
    %1199 = vmatpush.bf16.msra.mxu0 %v1119
    %1200 = vmatpush.bf16.msra.mxu0 %v1115
    %1201 = vmatpush.bf16.msra.mxu0 %v1111
    %1202 = vmatpush.bf16.msra.mxu0 %v1107
    %1203 = vmatmul.bf16.gmra.mxu0 %v966
    %v1204 = vpop.f32.mrf.mxu0
    %v1205 = vadd.f32 %v1003, %v1204
    %v1206 = vpop.f32.mrf.mxu0
    %1207 = vdwg.mxu0
    %1208 = vmatpush.bf16.msra.mxu0 %v1136
    %1209 = vmatpush.bf16.msra.mxu0 %v1132
    %1210 = vmatpush.bf16.msra.mxu0 %v1128
    %1211 = vmatpush.bf16.msra.mxu0 %v1124
    %1212 = vmatpush.bf16.msra.mxu0 %v1120
    %1213 = vmatpush.bf16.msra.mxu0 %v1116
    %1214 = vmatpush.bf16.msra.mxu0 %v1112
    %1215 = vmatpush.bf16.msra.mxu0 %v1108
    %1216 = vmatmul.bf16.gmra.mxu0 %v966
    %v1217 = vpop.f32.mrf.mxu0
    %v1218 = vadd.f32 %v1004, %v1217
    %v1219 = vpop.f32.mrf.mxu0
    %1220 = vdwg.mxu0
    %v1221 = vmax.f32 %v1179, 0.0
    %v1222 = vmax.f32 %v1192, 0.0
    %v1223 = vmax.f32 %v1205, 0.0
    %v1224 = vmax.f32 %v1218, 0.0
    %v1225 = vpack.c.bf16 %v1221, %v1221
    %v1226 = vpack.c.bf16 %v1222, %v1222
    %v1227 = vpack.c.bf16 %v1223, %v1223
    %v1228 = vpack.c.bf16 %v1224, %v1224
    %v1229 = vld [vmem:[#allocation13] sm:$0xff]
    %v1230 = vld [vmem:[#allocation13 + $0x8] sm:$0xff]
    %v1231 = vld [vmem:[#allocation13 + $0x10] sm:$0xff]
    %v1232 = vld [vmem:[#allocation13 + $0x18] sm:$0xff]
    %v1233 = vld [vmem:[#allocation13 + $0x20] sm:$0xff]
    %v1234 = vld [vmem:[#allocation13 + $0x28] sm:$0xff]
    %v1235 = vld [vmem:[#allocation13 + $0x30] sm:$0xff]
    %v1236 = vld [vmem:[#allocation13 + $0x38] sm:$0xff]
    %v1237 = vld [vmem:[#allocation13 + $0x40] sm:$0xff]
    %v1238 = vld [vmem:[#allocation13 + $0x48] sm:$0xff]
    %v1239 = vld [vmem:[#allocation13 + $0x50] sm:$0xff]
    %v1240 = vld [vmem:[#allocation13 + $0x58] sm:$0xff]
    %v1241 = vld [vmem:[#allocation13 + $0x60] sm:$0xff]
    %v1242 = vld [vmem:[#allocation13 + $0x68] sm:$0xff]
    %v1243 = vld [vmem:[#allocation13 + $0x70] sm:$0xff]
    %v1244 = vld [vmem:[#allocation13 + $0x78] sm:$0xff]
    %v1245 = vld [vmem:[#allocation13 + $0x80] sm:$0xff]
    %v1246 = vld [vmem:[#allocation13 + $0x88] sm:$0xff]
    %v1247 = vld [vmem:[#allocation13 + $0x90] sm:$0xff]
    %v1248 = vld [vmem:[#allocation13 + $0x98] sm:$0xff]
    %v1249 = vld [vmem:[#allocation13 + $0xa0] sm:$0xff]
    %v1250 = vld [vmem:[#allocation13 + $0xa8] sm:$0xff]
    %v1251 = vld [vmem:[#allocation13 + $0xb0] sm:$0xff]
    %v1252 = vld [vmem:[#allocation13 + $0xb8] sm:$0xff]
    %v1253 = vld [vmem:[#allocation13 + $0xc0] sm:$0xff]
    %v1254 = vld [vmem:[#allocation13 + $0xc8] sm:$0xff]
    %v1255 = vld [vmem:[#allocation13 + $0xd0] sm:$0xff]
    %v1256 = vld [vmem:[#allocation13 + $0xd8] sm:$0xff]
    %v1257 = vld [vmem:[#allocation13 + $0xe0] sm:$0xff]
    %v1258 = vld [vmem:[#allocation13 + $0xe8] sm:$0xff]
    %v1259 = vld [vmem:[#allocation13 + $0xf0] sm:$0xff]
    %v1260 = vld [vmem:[#allocation13 + $0xf8] sm:$0xff]
    %v1261 = vld [vmem:[#allocation13 + $0x100] sm:$0xff]
    %v1262 = vld [vmem:[#allocation13 + $0x108] sm:$0xff]
    %v1263 = vld [vmem:[#allocation13 + $0x110] sm:$0xff]
    %v1264 = vld [vmem:[#allocation13 + $0x118] sm:$0xff]
    %v1265 = vld [vmem:[#allocation13 + $0x120] sm:$0xff]
    %v1266 = vld [vmem:[#allocation13 + $0x128] sm:$0xff]
    %v1267 = vld [vmem:[#allocation13 + $0x130] sm:$0xff]
    %v1268 = vld [vmem:[#allocation13 + $0x138] sm:$0xff]
    %v1269 = vld [vmem:[#allocation13 + $0x140] sm:$0xff]
    %v1270 = vld [vmem:[#allocation13 + $0x148] sm:$0xff]
    %v1271 = vld [vmem:[#allocation13 + $0x150] sm:$0xff]
    %v1272 = vld [vmem:[#allocation13 + $0x158] sm:$0xff]
    %v1273 = vld [vmem:[#allocation13 + $0x160] sm:$0xff]
    %v1274 = vld [vmem:[#allocation13 + $0x168] sm:$0xff]
    %v1275 = vld [vmem:[#allocation13 + $0x170] sm:$0xff]
    %v1276 = vld [vmem:[#allocation13 + $0x178] sm:$0xff]
    %v1277 = vld [vmem:[#allocation13 + $0x180] sm:$0xff]
    %v1278 = vld [vmem:[#allocation13 + $0x188] sm:$0xff]
    %v1279 = vld [vmem:[#allocation13 + $0x190] sm:$0xff]
    %v1280 = vld [vmem:[#allocation13 + $0x198] sm:$0xff]
    %v1281 = vld [vmem:[#allocation13 + $0x1a0] sm:$0xff]
    %v1282 = vld [vmem:[#allocation13 + $0x1a8] sm:$0xff]
    %v1283 = vld [vmem:[#allocation13 + $0x1b0] sm:$0xff]
    %v1284 = vld [vmem:[#allocation13 + $0x1b8] sm:$0xff]
    %v1285 = vld [vmem:[#allocation13 + $0x1c0] sm:$0xff]
    %v1286 = vld [vmem:[#allocation13 + $0x1c8] sm:$0xff]
    %v1287 = vld [vmem:[#allocation13 + $0x1d0] sm:$0xff]
    %v1288 = vld [vmem:[#allocation13 + $0x1d8] sm:$0xff]
    %v1289 = vld [vmem:[#allocation13 + $0x1e0] sm:$0xff]
    %v1290 = vld [vmem:[#allocation13 + $0x1e8] sm:$0xff]
    %v1291 = vld [vmem:[#allocation13 + $0x1f0] sm:$0xff]
    %v1292 = vld [vmem:[#allocation13 + $0x1f8] sm:$0xff]
    %v1293 = vld [vmem:[%s8] sm:$0x3]
    %v1295 = vperm.slane %v1293, 0
    %v1296 = vperm.slane %v1293, 1
    %v1363 = vunpack.c.l.b16 %v1229
    %v1364 = vunpack.c.h.b16 %v1229
    %v1365 = vunpack.c.l.b16 %v1230
    %v1366 = vunpack.c.h.b16 %v1230
    %v1367 = vunpack.c.l.b16 %v1231
    %v1368 = vunpack.c.h.b16 %v1231
    %v1369 = vunpack.c.l.b16 %v1232
    %v1370 = vunpack.c.h.b16 %v1232
    %v1371 = vunpack.c.l.b16 %v1233
    %v1372 = vunpack.c.h.b16 %v1233
    %v1373 = vunpack.c.l.b16 %v1234
    %v1374 = vunpack.c.h.b16 %v1234
    %v1375 = vunpack.c.l.b16 %v1235
    %v1376 = vunpack.c.h.b16 %v1235
    %v1377 = vunpack.c.l.b16 %v1236
    %v1378 = vunpack.c.h.b16 %v1236
    %v1379 = vunpack.c.l.b16 %v1237
    %v1380 = vunpack.c.h.b16 %v1237
    %v1381 = vunpack.c.l.b16 %v1238
    %v1382 = vunpack.c.h.b16 %v1238
    %v1383 = vunpack.c.l.b16 %v1239
    %v1384 = vunpack.c.h.b16 %v1239
    %v1385 = vunpack.c.l.b16 %v1240
    %v1386 = vunpack.c.h.b16 %v1240
    %v1387 = vunpack.c.l.b16 %v1241
    %v1388 = vunpack.c.h.b16 %v1241
    %v1389 = vunpack.c.l.b16 %v1242
    %v1390 = vunpack.c.h.b16 %v1242
    %v1391 = vunpack.c.l.b16 %v1243
    %v1392 = vunpack.c.h.b16 %v1243
    %v1393 = vunpack.c.l.b16 %v1244
    %v1394 = vunpack.c.h.b16 %v1244
    %v1395 = vunpack.c.l.b16 %v1245
    %v1396 = vunpack.c.h.b16 %v1245
    %v1397 = vunpack.c.l.b16 %v1246
    %v1398 = vunpack.c.h.b16 %v1246
    %v1399 = vunpack.c.l.b16 %v1247
    %v1400 = vunpack.c.h.b16 %v1247
    %v1401 = vunpack.c.l.b16 %v1248
    %v1402 = vunpack.c.h.b16 %v1248
    %v1403 = vunpack.c.l.b16 %v1249
    %v1404 = vunpack.c.h.b16 %v1249
    %v1405 = vunpack.c.l.b16 %v1250
    %v1406 = vunpack.c.h.b16 %v1250
    %v1407 = vunpack.c.l.b16 %v1251
    %v1408 = vunpack.c.h.b16 %v1251
    %v1409 = vunpack.c.l.b16 %v1252
    %v1410 = vunpack.c.h.b16 %v1252
    %v1411 = vunpack.c.l.b16 %v1253
    %v1412 = vunpack.c.h.b16 %v1253
    %v1413 = vunpack.c.l.b16 %v1254
    %v1414 = vunpack.c.h.b16 %v1254
    %v1415 = vunpack.c.l.b16 %v1255
    %v1416 = vunpack.c.h.b16 %v1255
    %v1417 = vunpack.c.l.b16 %v1256
    %v1418 = vunpack.c.h.b16 %v1256
    %v1419 = vunpack.c.l.b16 %v1257
    %v1420 = vunpack.c.h.b16 %v1257
    %v1421 = vunpack.c.l.b16 %v1258
    %v1422 = vunpack.c.h.b16 %v1258
    %v1423 = vunpack.c.l.b16 %v1259
    %v1424 = vunpack.c.h.b16 %v1259
    %v1425 = vunpack.c.l.b16 %v1260
    %v1426 = vunpack.c.h.b16 %v1260
    %v1427 = vunpack.c.l.b16 %v1261
    %v1428 = vunpack.c.h.b16 %v1261
    %v1429 = vunpack.c.l.b16 %v1262
    %v1430 = vunpack.c.h.b16 %v1262
    %v1431 = vunpack.c.l.b16 %v1263
    %v1432 = vunpack.c.h.b16 %v1263
    %v1433 = vunpack.c.l.b16 %v1264
    %v1434 = vunpack.c.h.b16 %v1264
    %v1435 = vunpack.c.l.b16 %v1265
    %v1436 = vunpack.c.h.b16 %v1265
    %v1437 = vunpack.c.l.b16 %v1266
    %v1438 = vunpack.c.h.b16 %v1266
    %v1439 = vunpack.c.l.b16 %v1267
    %v1440 = vunpack.c.h.b16 %v1267
    %v1441 = vunpack.c.l.b16 %v1268
    %v1442 = vunpack.c.h.b16 %v1268
    %v1443 = vunpack.c.l.b16 %v1269
    %v1444 = vunpack.c.h.b16 %v1269
    %v1445 = vunpack.c.l.b16 %v1270
    %v1446 = vunpack.c.h.b16 %v1270
    %v1447 = vunpack.c.l.b16 %v1271
    %v1448 = vunpack.c.h.b16 %v1271
    %v1449 = vunpack.c.l.b16 %v1272
    %v1450 = vunpack.c.h.b16 %v1272
    %v1451 = vunpack.c.l.b16 %v1273
    %v1452 = vunpack.c.h.b16 %v1273
    %v1453 = vunpack.c.l.b16 %v1274
    %v1454 = vunpack.c.h.b16 %v1274
    %v1455 = vunpack.c.l.b16 %v1275
    %v1456 = vunpack.c.h.b16 %v1275
    %v1457 = vunpack.c.l.b16 %v1276
    %v1458 = vunpack.c.h.b16 %v1276
    %v1459 = vunpack.c.l.b16 %v1277
    %v1460 = vunpack.c.h.b16 %v1277
    %v1461 = vunpack.c.l.b16 %v1278
    %v1462 = vunpack.c.h.b16 %v1278
    %v1463 = vunpack.c.l.b16 %v1279
    %v1464 = vunpack.c.h.b16 %v1279
    %v1465 = vunpack.c.l.b16 %v1280
    %v1466 = vunpack.c.h.b16 %v1280
    %v1467 = vunpack.c.l.b16 %v1281
    %v1468 = vunpack.c.h.b16 %v1281
    %v1469 = vunpack.c.l.b16 %v1282
    %v1470 = vunpack.c.h.b16 %v1282
    %v1471 = vunpack.c.l.b16 %v1283
    %v1472 = vunpack.c.h.b16 %v1283
    %v1473 = vunpack.c.l.b16 %v1284
    %v1474 = vunpack.c.h.b16 %v1284
    %v1475 = vunpack.c.l.b16 %v1285
    %v1476 = vunpack.c.h.b16 %v1285
    %v1477 = vunpack.c.l.b16 %v1286
    %v1478 = vunpack.c.h.b16 %v1286
    %v1479 = vunpack.c.l.b16 %v1287
    %v1480 = vunpack.c.h.b16 %v1287
    %v1481 = vunpack.c.l.b16 %v1288
    %v1482 = vunpack.c.h.b16 %v1288
    %v1483 = vunpack.c.l.b16 %v1289
    %v1484 = vunpack.c.h.b16 %v1289
    %v1485 = vunpack.c.l.b16 %v1290
    %v1486 = vunpack.c.h.b16 %v1290
    %v1487 = vunpack.c.l.b16 %v1291
    %v1488 = vunpack.c.h.b16 %v1291
    %v1489 = vunpack.c.l.b16 %v1292
    %v1490 = vunpack.c.h.b16 %v1292
    %v1491 = vpack.c.b16 %v1365, %v1363
    %v1492 = vpack.c.b16 %v1366, %v1364
    %v1493 = vpack.c.b16 %v1369, %v1367
    %v1494 = vpack.c.b16 %v1370, %v1368
    %v1495 = vpack.c.b16 %v1373, %v1371
    %v1496 = vpack.c.b16 %v1374, %v1372
    %v1497 = vpack.c.b16 %v1377, %v1375
    %v1498 = vpack.c.b16 %v1378, %v1376
    %v1499 = vpack.c.b16 %v1381, %v1379
    %v1500 = vpack.c.b16 %v1382, %v1380
    %v1501 = vpack.c.b16 %v1385, %v1383
    %v1502 = vpack.c.b16 %v1386, %v1384
    %v1503 = vpack.c.b16 %v1389, %v1387
    %v1504 = vpack.c.b16 %v1390, %v1388
    %v1505 = vpack.c.b16 %v1393, %v1391
    %v1506 = vpack.c.b16 %v1394, %v1392
    %v1507 = vpack.c.b16 %v1397, %v1395
    %v1508 = vpack.c.b16 %v1398, %v1396
    %v1509 = vpack.c.b16 %v1401, %v1399
    %v1510 = vpack.c.b16 %v1402, %v1400
    %v1511 = vpack.c.b16 %v1405, %v1403
    %v1512 = vpack.c.b16 %v1406, %v1404
    %v1513 = vpack.c.b16 %v1409, %v1407
    %v1514 = vpack.c.b16 %v1410, %v1408
    %v1515 = vpack.c.b16 %v1413, %v1411
    %v1516 = vpack.c.b16 %v1414, %v1412
    %v1517 = vpack.c.b16 %v1417, %v1415
    %v1518 = vpack.c.b16 %v1418, %v1416
    %v1519 = vpack.c.b16 %v1421, %v1419
    %v1520 = vpack.c.b16 %v1422, %v1420
    %v1521 = vpack.c.b16 %v1425, %v1423
    %v1522 = vpack.c.b16 %v1426, %v1424
    %v1523 = vpack.c.b16 %v1429, %v1427
    %v1524 = vpack.c.b16 %v1430, %v1428
    %v1525 = vpack.c.b16 %v1433, %v1431
    %v1526 = vpack.c.b16 %v1434, %v1432
    %v1527 = vpack.c.b16 %v1437, %v1435
    %v1528 = vpack.c.b16 %v1438, %v1436
    %v1529 = vpack.c.b16 %v1441, %v1439
    %v1530 = vpack.c.b16 %v1442, %v1440
    %v1531 = vpack.c.b16 %v1445, %v1443
    %v1532 = vpack.c.b16 %v1446, %v1444
    %v1533 = vpack.c.b16 %v1449, %v1447
    %v1534 = vpack.c.b16 %v1450, %v1448
    %v1535 = vpack.c.b16 %v1453, %v1451
    %v1536 = vpack.c.b16 %v1454, %v1452
    %v1537 = vpack.c.b16 %v1457, %v1455
    %v1538 = vpack.c.b16 %v1458, %v1456
    %v1539 = vpack.c.b16 %v1461, %v1459
    %v1540 = vpack.c.b16 %v1462, %v1460
    %v1541 = vpack.c.b16 %v1465, %v1463
    %v1542 = vpack.c.b16 %v1466, %v1464
    %v1543 = vpack.c.b16 %v1469, %v1467
    %v1544 = vpack.c.b16 %v1470, %v1468
    %v1545 = vpack.c.b16 %v1473, %v1471
    %v1546 = vpack.c.b16 %v1474, %v1472
    %v1547 = vpack.c.b16 %v1477, %v1475
    %v1548 = vpack.c.b16 %v1478, %v1476
    %v1549 = vpack.c.b16 %v1481, %v1479
    %v1550 = vpack.c.b16 %v1482, %v1480
    %v1551 = vpack.c.b16 %v1485, %v1483
    %v1552 = vpack.c.b16 %v1486, %v1484
    %v1553 = vpack.c.b16 %v1489, %v1487
    %v1554 = vpack.c.b16 %v1490, %v1488
    %1619 = vmatpush.bf16.msra.mxu0 %v1505
    %1620 = vmatpush.bf16.msra.mxu0 %v1503
    %1621 = vmatpush.bf16.msra.mxu0 %v1501
    %1622 = vmatpush.bf16.msra.mxu0 %v1499
    %1623 = vmatpush.bf16.msra.mxu0 %v1497
    %1624 = vmatpush.bf16.msra.mxu0 %v1495
    %1625 = vmatpush.bf16.msra.mxu0 %v1493
    %1626 = vmatpush.bf16.msra.mxu0 %v1491
    %1627 = vmatmul.bf16.gmra.mxu0 %v1225
    %v1628 = vpop.f32.mrf.mxu0
    %v1629 = vadd.f32 %v1295, %v1628
    %v1630 = vpop.f32.mrf.mxu0
    %1631 = vdwg.mxu0
    %1632 = vmatpush.bf16.msra.mxu0 %v1521
    %1633 = vmatpush.bf16.msra.mxu0 %v1519
    %1634 = vmatpush.bf16.msra.mxu0 %v1517
    %1635 = vmatpush.bf16.msra.mxu0 %v1515
    %1636 = vmatpush.bf16.msra.mxu0 %v1513
    %1637 = vmatpush.bf16.msra.mxu0 %v1511
    %1638 = vmatpush.bf16.msra.mxu0 %v1509
    %1639 = vmatpush.bf16.msra.mxu0 %v1507
    %1640 = vmatmul.bf16.gmra.mxu0 %v1226
    %v1641 = vpop.f32.mrf.mxu0
    %v1642 = vadd.f32 %v1629, %v1641
    %v1643 = vpop.f32.mrf.mxu0
    %1644 = vdwg.mxu0
    %1645 = vmatpush.bf16.msra.mxu0 %v1537
    %1646 = vmatpush.bf16.msra.mxu0 %v1535
    %1647 = vmatpush.bf16.msra.mxu0 %v1533
    %1648 = vmatpush.bf16.msra.mxu0 %v1531
    %1649 = vmatpush.bf16.msra.mxu0 %v1529
    %1650 = vmatpush.bf16.msra.mxu0 %v1527
    %1651 = vmatpush.bf16.msra.mxu0 %v1525
    %1652 = vmatpush.bf16.msra.mxu0 %v1523
    %1653 = vmatmul.bf16.gmra.mxu0 %v1227
    %v1654 = vpop.f32.mrf.mxu0
    %v1655 = vadd.f32 %v1642, %v1654
    %v1656 = vpop.f32.mrf.mxu0
    %1657 = vdwg.mxu0
    %1658 = vmatpush.bf16.msra.mxu0 %v1553
    %1659 = vmatpush.bf16.msra.mxu0 %v1551
    %1660 = vmatpush.bf16.msra.mxu0 %v1549
    %1661 = vmatpush.bf16.msra.mxu0 %v1547
    %1662 = vmatpush.bf16.msra.mxu0 %v1545
    %1663 = vmatpush.bf16.msra.mxu0 %v1543
    %1664 = vmatpush.bf16.msra.mxu0 %v1541
    %1665 = vmatpush.bf16.msra.mxu0 %v1539
    %1666 = vmatmul.bf16.gmra.mxu0 %v1228
    %v1667 = vpop.f32.mrf.mxu0
    %v1668 = vadd.f32 %v1655, %v1667
    %v1669 = vpop.f32.mrf.mxu0
    %1670 = vdwg.mxu0
    %1671 = vmatpush.bf16.msra.mxu0 %v1506
    %1672 = vmatpush.bf16.msra.mxu0 %v1504
    %1673 = vmatpush.bf16.msra.mxu0 %v1502
    %1674 = vmatpush.bf16.msra.mxu0 %v1500
    %1675 = vmatpush.bf16.msra.mxu0 %v1498
    %1676 = vmatpush.bf16.msra.mxu0 %v1496
    %1677 = vmatpush.bf16.msra.mxu0 %v1494
    %1678 = vmatpush.bf16.msra.mxu0 %v1492
    %1679 = vmatmul.bf16.gmra.mxu0 %v1225
    %v1680 = vpop.f32.mrf.mxu0
    %v1681 = vadd.f32 %v1296, %v1680
    %v1682 = vpop.f32.mrf.mxu0
    %1683 = vdwg.mxu0
    %1684 = vmatpush.bf16.msra.mxu0 %v1522
    %1685 = vmatpush.bf16.msra.mxu0 %v1520
    %1686 = vmatpush.bf16.msra.mxu0 %v1518
    %1687 = vmatpush.bf16.msra.mxu0 %v1516
    %1688 = vmatpush.bf16.msra.mxu0 %v1514
    %1689 = vmatpush.bf16.msra.mxu0 %v1512
    %1690 = vmatpush.bf16.msra.mxu0 %v1510
    %1691 = vmatpush.bf16.msra.mxu0 %v1508
    %1692 = vmatmul.bf16.gmra.mxu0 %v1226
    %v1693 = vpop.f32.mrf.mxu0
    %v1694 = vadd.f32 %v1681, %v1693
    %v1695 = vpop.f32.mrf.mxu0
    %1696 = vdwg.mxu0
    %1697 = vmatpush.bf16.msra.mxu0 %v1538
    %1698 = vmatpush.bf16.msra.mxu0 %v1536
    %1699 = vmatpush.bf16.msra.mxu0 %v1534
    %1700 = vmatpush.bf16.msra.mxu0 %v1532
    %1701 = vmatpush.bf16.msra.mxu0 %v1530
    %1702 = vmatpush.bf16.msra.mxu0 %v1528
    %1703 = vmatpush.bf16.msra.mxu0 %v1526
    %1704 = vmatpush.bf16.msra.mxu0 %v1524
    %1705 = vmatmul.bf16.gmra.mxu0 %v1227
    %v1706 = vpop.f32.mrf.mxu0
    %v1707 = vadd.f32 %v1694, %v1706
    %v1708 = vpop.f32.mrf.mxu0
    %1709 = vdwg.mxu0
    %1710 = vmatpush.bf16.msra.mxu0 %v1554
    %1711 = vmatpush.bf16.msra.mxu0 %v1552
    %1712 = vmatpush.bf16.msra.mxu0 %v1550
    %1713 = vmatpush.bf16.msra.mxu0 %v1548
    %1714 = vmatpush.bf16.msra.mxu0 %v1546
    %1715 = vmatpush.bf16.msra.mxu0 %v1544
    %1716 = vmatpush.bf16.msra.mxu0 %v1542
    %1717 = vmatpush.bf16.msra.mxu0 %v1540
    %1718 = vmatmul.bf16.gmra.mxu0 %v1228
    %v1719 = vpop.f32.mrf.mxu0
    %v1720 = vadd.f32 %v1707, %v1719
    %v1721 = vpop.f32.mrf.mxu0
    %1722 = vdwg.mxu0
    %v1723 = vxor.u32 %v1668, 2147483648
    %v1724 = vxor.u32 %v1720, 2147483648
    %v1725 = vmul.f32 %v1723, 1.442695
    %v1726 = vpow.pop %v1725
    %v1727 = vmul.f32 %v1724, 1.442695
    %v1728 = vpow.pop %v1727
    %v1729 = vadd.f32 %v1726, 1.0
    %v1730 = vadd.f32 %v1728, 1.0
    %v1731 = vrcp.pop %v1729
    %v1732 = vmul.f32 %v1729, %v1731
    %v1733 = vsub.f32 1.0, %v1732
    %v1734 = vmul.f32 %v1731, %v1733
    %v1735 = vadd.f32 %v1731, %v1734
    %vm1736 = vweird.f32 %v1729
    %vm1737 = vweird.f32 %v1731
    %vm1738 = vmor %vm1736, %vm1737
    %v1739 = vsel %vm1738, %v1731, %v1735
    %v1740 = vand.u32 2147483647, %v1729
    %vm1741 = vcmp.eq.f32.partialorder %v1740, 8.507059e+37
    %v1742 = vand.u32 %v1729, 2147483648
    %v1743 = vor.u32 1.1754944e-38, %v1742
    %v1744 = vsel %vm1741, %v1743, %v1739
    %v1745 = vmul.f32 1.0, %v1744
    %v1746 = vrcp.pop %v1730
    %v1747 = vmul.f32 %v1730, %v1746
    %v1748 = vsub.f32 1.0, %v1747
    %v1749 = vmul.f32 %v1746, %v1748
    %v1750 = vadd.f32 %v1746, %v1749
    %vm1751 = vweird.f32 %v1730
    %vm1752 = vweird.f32 %v1746
    %vm1753 = vmor %vm1751, %vm1752
    %v1754 = vsel %vm1753, %v1746, %v1750
    %v1755 = vand.u32 2147483647, %v1730
    %vm1756 = vcmp.eq.f32.partialorder %v1755, 8.507059e+37
    %v1757 = vand.u32 %v1730, 2147483648
    %v1758 = vor.u32 1.1754944e-38, %v1757
    %v1759 = vsel %vm1756, %v1758, %v1754
    %v1760 = vmul.f32 1.0, %v1759
    %1761 = vst [vmem:[#allocation14] sm:$0xff] %v1745
    %1762 = vst [vmem:[#allocation14 + $0x8] sm:$0xff] %v1760
    // Predicated region
    $region66: #{tpu_custom_call.1} parent=1 // pred_check
      _
    $region67: #{tpu_custom_call.1} parent=1 // pred_check_branch
      %1764 = sbr.rel (0) target = $region69
    $region68: #{tpu_custom_call.1} parent=1 // pred_region
      %1766 = vsyncadd [#allocation4], 0
      %s1768 = sshll.u32 [#allocation14], 4
      %s1769 = int_to_ptr.vmem [resolvable:$true] %s1768
      %s1770 = sshll.u32 %s9, 4
      %s1771 = int_to_ptr.hbm [resolvable:$true] %s1770
      %1773 = dma.vmem_to_hbm [thread:$0]  %s1769, 256, %s1771, [#allocation4]
    $region69: #{tpu_custom_call.1} parent=1 // pred_fallthru
      _
    // Predicated region
    $region70: #{tpu_custom_call.1} parent=1 // pred_check
      _
    $region71: #{tpu_custom_call.1} parent=1 // pred_check_branch
      %1775 = sbr.rel (0) target = $region73
    $region72: #{tpu_custom_call.1} parent=1 // pred_region
      %1777 = vsyncadd [#allocation16], 0
      %s1779 = sshll.u32 [#allocation15], 4
      %s1780 = int_to_ptr.vmem [resolvable:$true] %s1779
      %s1781 = sshll.u32 %s10, 4
      %s1782 = int_to_ptr.hbm [resolvable:$true] %s1781
      %1784 = dma.vmem_to_hbm [thread:$0]  %s1780, 128, %s1782, [#allocation16]
    $region73: #{tpu_custom_call.1} parent=1 // pred_fallthru
      _
    // Predicated region
    $region74: #{tpu_custom_call.1} parent=1 // pred_check
      _
    $region75: #{tpu_custom_call.1} parent=1 // pred_check_branch
      %1786 = sbr.rel (0) target = $region77
    $region76: #{tpu_custom_call.1} parent=1 // pred_region
      %1788 = dma.done [#allocation4], 256
    $region77: #{tpu_custom_call.1} parent=1 // pred_fallthru
      _
    // Predicated region
    $region78: #{tpu_custom_call.1} parent=1 // pred_check
      _
    $region79: #{tpu_custom_call.1} parent=1 // pred_check_branch
      %1790 = sbr.rel (0) target = $region81
    $region80: #{tpu_custom_call.1} parent=1 // pred_region
      %1792 = dma.done [#allocation16], 128
    $region81: #{tpu_custom_call.1} parent=1 // pred_fallthru
      _
    %1793 = vsyncpa [#allocation3], 1
    %1794 = vsyncpa [#allocation6], 1
    %1795 = vsyncpa [#allocation9], 1
    %1796 = vsyncpa [#allocation12], 1
    %1797 = vsyncpa [#allocation4], 1
    %1798 = vsyncpa [#allocation16], 1

</llo_original>
